<compile_context>
chip_gen: v6e
topology: v6e:2x2x1
jax: 0.10.0
libtpu: 0.0.40
codegen_flags: <defaults>
</compile_context>

<pallas_src>
import jax
import jax.numpy as jnp
import numpy as np
from jax import lax
from jax.experimental import pallas as pl
from jax.experimental.pallas import tpu as pltpu


def _layernorm(h, gamma, beta, eps=1e-5):
    """Two-pass LayerNorm (robust for post-ReLU data; avoids E[x^2]-mu^2 cancellation)."""
    mu = jnp.mean(h, axis=-1, keepdims=True)
    d = h - mu
    var = jnp.mean(d * d, axis=-1, keepdims=True)
    return d * lax.rsqrt(var + eps) * gamma + beta


def _build_token_kernel(n_ln, n_extra):
    """Stage-1 kernel (one batch tile per grid step).

    ref order: esm (Bt,S,Din) bf16, mask (Bt,S) f32, fw (Din,E) bf16,
               fb (1,E) f32, [ag, az (n_ln,1,E) f32], [aw2 (n_extra,E,E) bf16,
               ab2 (n_extra,1,E) f32], pooled (Bt,E) f32 (output).
    """

    def kernel(*refs):
        it = iter(refs)
        esm_ref, mask_ref, fw_ref, fb_ref = next(it), next(it), next(it), next(it)
        ag_ref = next(it) if n_ln else None
        az_ref = next(it) if n_ln else None
        aw2_ref = next(it) if n_extra else None
        ab2_ref = next(it) if n_extra else None
        pooled_ref = next(it)

        Bt, S, Din = esm_ref.shape
        E = fw_ref.shape[1]

        # Fold batch and sequence into the matmul M dimension (free reshape:
        # S is padded to the bf16 sublane pack in the wrapper).
        x = esm_ref[...].reshape(Bt * S, Din)

        # Fused projection (+ first amino_acid_ffn linear): bf16 MXU, f32 acc.
        h = jnp.dot(x, fw_ref[...], preferred_element_type=jnp.float32) + fb_ref[...]

        # Remaining amino_acid_ffn hidden blocks: ReLU -> LayerNorm (-> Linear).
        for l in range(n_ln):
            h = jnp.maximum(h, 0.0)
            h = _layernorm(h, ag_ref[l], az_ref[l])
            if l < n_extra:
                h = jnp.dot(h.astype(jnp.bfloat16), aw2_ref[l],
                            preferred_element_type=jnp.float32) + ab2_ref[l]

        # Masked mean over the sequence axis (VPU multiply + XLU reduce).
        mask = mask_ref[...]                                    # (Bt, S) f32
        h3 = h.reshape(Bt, S, E)
        summed = jnp.sum(h3 * mask[:, :, None], axis=1)         # (Bt, E)
        cnt = jnp.maximum(jnp.sum(mask, axis=-1, keepdims=True), 1.0)
        pooled_ref[...] = (summed / cnt).astype(pooled_ref.dtype)

    return kernel


def _build_head_kernel(n_ln):
    """Stage-2 kernel (whole batch, single invocation, everything in VMEM).

    ref order: pooled (B,E) f32, bscale (B,1) f32, temp (B,1) f32,
               afw (E,E) bf16, afb (1,E) f32,
               [ew (n_ln,E,E) bf16, eb/eg/ez (n_ln,1,E) f32],
               efw (E,E) bf16, efb (1,E) f32, out (B,E) f32 (output).
    """

    def kernel(*refs):
        it = iter(refs)
        pooled_ref, bscale_ref, temp_ref = next(it), next(it), next(it)
        afw_ref, afb_ref = next(it), next(it)
        ew_ref = next(it) if n_ln else None
        eb_ref = next(it) if n_ln else None
        eg_ref = next(it) if n_ln else None
        ez_ref = next(it) if n_ln else None
        efw_ref, efb_ref = next(it), next(it)
        out_ref = next(it)

        # Final amino_acid_ffn linear, applied after pooling.  bscale = min(sum
        # mask, 1) keeps the all-masked edge case exact.
        g = jnp.dot(pooled_ref[...].astype(jnp.bfloat16), afw_ref[...],
                    preferred_element_type=jnp.float32)
        g = g + afb_ref[...] * bscale_ref[...]

        # embedding_ffn: (Linear -> ReLU -> LayerNorm)^(h2-1) + Linear.
        for l in range(n_ln):
            g = jnp.dot(g.astype(jnp.bfloat16), ew_ref[l],
                        preferred_element_type=jnp.float32) + eb_ref[l]
            g = jnp.maximum(g, 0.0)
            g = _layernorm(g, eg_ref[l], ez_ref[l])
        g = jnp.dot(g.astype(jnp.bfloat16), efw_ref[...],
                    preferred_element_type=jnp.float32) + efb_ref[...]

        # F.normalize(dim=-1, eps=1e-12) then scale by exp(temperature / 2).
        sumsq = jnp.sum(g * g, axis=-1, keepdims=True)
        normed = g * lax.rsqrt(jnp.maximum(sumsq, 1e-24))
        out_ref[...] = (normed * jnp.exp(temp_ref[...] * 0.5)).astype(out_ref.dtype)

    return kernel


def _vmem_limit_bytes():
    """Generation-aware VMEM limit: ~80% of physical (v5e/v6e ~100 MiB, v7x ~51 MiB)."""
    try:
        return int(pltpu.get_tpu_info().vmem_capacity_bytes * 0.8)
    except Exception:  # hardware query unavailable — 48 MiB is safe on every gen (incl. v7x)
        return 48 * 1024 * 1024


def _pick_block_b(B, S, Din, E, vmem_limit):
    """Largest batch tile whose working set fits the VMEM budget.

    Model (bytes / sequence in a tile): double-buffered bf16 esm input + f32
    mask, plus ~3 live f32 (S, E) activation slabs.  The tile must divide B and
    keep the (block_b, ...) sublane dim 8-aligned (or cover B fully); >= 2 grid
    steps are preferred so a megacore can shard the parallel axis.  Maximal-
    under-budget naturally reaches the block_b*S >= 128/256 MXU M-dimension
    targets whenever B and VMEM allow.
    """
    per_seq = 2 * (S * Din * 2 + S * 4) + 3 * S * E * 4
    budget = max(vmem_limit - (8 << 20), per_seq)   # headroom for weights/output
    cap = max(1, budget // per_seq)
    cands = [c for c in range(1, B + 1) if B % c == 0 and (c % 8 == 0 or c == B)]
    fitting = [c for c in cands if c <= cap]
    multi = [c for c in fitting if B // c >= 2]
    if multi:
        return max(multi)
    if fitting:
        return max(fitting)
    return min(cands)   # smallest legal tile; for huge S consider sequence tiling


def _rep_spec(arr):
    """Grid-invariant (replicated) full-array block."""
    nd = arr.ndim
    return pl.BlockSpec(arr.shape, lambda b, _nd=nd: (0,) * _nd)


def encoder_forward(esm_emb, attn_mask, temperature, p, *, block_b=None):
    """esm_emb: (B, S, D_in) f32, attn_mask: (B, S), temperature: (B, 1)."""
    B, S, Din = esm_emb.shape
    E = p["proj_w"].shape[1]
    L1 = int(p["aa_w"].shape[0])
    L2 = int(p["emb_w"].shape[0])
    n_extra = max(L1 - 1, 0)

    # ---- pad S to the bf16 sublane pack; fold padding into the mask ----
    S_pad = ((S + 15) // 16) * 16
    mask2 = attn_mask.reshape(B, S).astype(jnp.float32)
    esm = esm_emb
    if S_pad != S:
        esm = jnp.pad(esm, ((0, 0), (0, S_pad - S), (0, 0)))
        mask2 = jnp.pad(mask2, ((0, 0), (0, S_pad - S)))
    esm16 = esm.astype(jnp.bfloat16)
    temp2 = temperature.reshape(B, 1).astype(jnp.float32)

    # ---- host-side fusion of the activation-free projection + aa linear 0 ----
    if L1 >= 1:
        fw = jnp.dot(p["proj_w"], p["aa_w"][0], preferred_element_type=jnp.float32)
        fb = jnp.dot(p["proj_b"], p["aa_w"][0],
                     preferred_element_type=jnp.float32) + p["aa_b"][0]
    else:
        fw, fb = p["proj_w"], p["proj_b"]
    fw16 = fw.astype(jnp.bfloat16)

    # ---- generation-aware VMEM limit and batch-tile size ----
    vmem_limit = _vmem_limit_bytes()
    if block_b is None:
        block_b = _pick_block_b(B, S_pad, Din, E, vmem_limit)
    n_steps = B // block_b

    # ---- stage 1: per-token work + masked mean ----
    args = [esm16, mask2, fw16, fb]
    in_specs = [
        pl.BlockSpec((block_b, S_pad, Din), lambda b: (b, 0, 0)),   # esm block
        pl.BlockSpec((block_b, S_pad), lambda b: (b, 0)),           # mask block
        _rep_spec(fw16), _rep_spec(fb),
    ]
    if L1 >= 1:
        args += [p["aa_g"], p["aa_z"]]
        in_specs += [_rep_spec(p["aa_g"]), _rep_spec(p["aa_z"])]
    if n_extra:
        aw2_16 = p["aa_w"][1:].astype(jnp.bfloat16)
        ab2 = p["aa_b"][1:]
        args += [aw2_16, ab2]
        in_specs += [_rep_spec(aw2_16), _rep_spec(ab2)]

    pooled = pl.pallas_call(
        _build_token_kernel(L1, n_extra),
        out_shape=jax.ShapeDtypeStruct((B, E), jnp.float32),
        grid_spec=pltpu.PrefetchScalarGridSpec(
            num_scalar_prefetch=0,
            grid=(n_steps,),
            in_specs=in_specs,
            out_specs=pl.BlockSpec((block_b, E), lambda b: (b, 0)),
        ),
        compiler_params=pltpu.CompilerParams(
            dimension_semantics=("parallel",),
            vmem_limit_bytes=vmem_limit),
    )(*args)

    # masked-mean bias weight for the (moved) final aa linear: min(sum(mask), 1)
    cnt = mask2.sum(-1, keepdims=True)
    bscale = cnt / jnp.maximum(cnt, 1.0)

    # ---- stage 2: pooled-row head (whole batch, single invocation) ----
    head_args = [pooled, bscale, temp2,
                 p["aa_fw"].astype(jnp.bfloat16), p["aa_fb"]]
    if L2 >= 1:
        head_args += [p["emb_w"].astype(jnp.bfloat16),
                      p["emb_b"], p["emb_g"], p["emb_z"]]
    head_args += [p["emb_fw"].astype(jnp.bfloat16), p["emb_fb"]]

    out = pl.pallas_call(
        _build_head_kernel(L2),
        out_shape=jax.ShapeDtypeStruct((B, E), jnp.float32),
    )(*head_args)
    return out


def make_params(key, Din, E, h1, h2):
    """Deterministic parameter init matching nn.Linear / nn.LayerNorm shapes."""
    ks = jax.random.split(key, 14)
    L1, L2 = h1 - 1, h2 - 1

    def lin(k, fan_in, shape):
        return jax.random.normal(k, shape, jnp.float32) / jnp.sqrt(fan_in)

    return {
        "proj_w": lin(ks[0], Din, (Din, E)),
        "proj_b": lin(ks[1], Din, (1, E)),
        "aa_w": lin(ks[2], E, (L1, E, E)),
        "aa_b": lin(ks[3], E, (L1, 1, E)),
        "aa_g": 1.0 + 0.1 * jax.random.normal(ks[4], (L1, 1, E), jnp.float32),
        "aa_z": 0.1 * jax.random.normal(ks[5], (L1, 1, E), jnp.float32),
        "aa_fw": lin(ks[6], E, (E, E)),
        "aa_fb": lin(ks[7], E, (1, E)),
        "emb_w": lin(ks[8], E, (L2, E, E)),
        "emb_b": lin(ks[9], E, (L2, 1, E)),
        "emb_g": 1.0 + 0.1 * jax.random.normal(ks[10], (L2, 1, E), jnp.float32),
        "emb_z": 0.1 * jax.random.normal(ks[11], (L2, 1, E), jnp.float32),
        "emb_fw": lin(ks[12], E, (E, E)),
        "emb_fb": lin(ks[13], E, (1, E)),
    }


def reference_forward(esm_emb, attn_mask, temperature, p):
    """Pure-JAX f32 reference mirroring the PyTorch forward (eval mode)."""

    def ffn(x, w, b, g, z, fw, fb):
        for l in range(w.shape[0]):
            x = x @ w[l] + b[l]
            x = jnp.maximum(x, 0.0)
            mu = x.mean(-1, keepdims=True)
            var = ((x - mu) ** 2).mean(-1, keepdims=True)
            x = (x - mu) / jnp.sqrt(var + 1e-5) * g[l] + z[l]
        return x @ fw + fb

    h = esm_emb @ p["proj_w"] + p["proj_b"]
    h = ffn(h, p["aa_w"], p["aa_b"], p["aa_g"], p["aa_z"], p["aa_fw"], p["aa_fb"])
    m = attn_mask.astype(jnp.float32)
    mean = (h * m[..., None]).sum(1) / jnp.maximum(m.sum(1, keepdims=True), 1.0)
    g = ffn(mean, p["emb_w"], p["emb_b"], p["emb_g"], p["emb_z"],
            p["emb_fw"], p["emb_fb"])
    norm = jnp.maximum(jnp.sqrt((g * g).sum(-1, keepdims=True)), 1e-12)
    return g / norm * jnp.exp(temperature / 2.0)


if __name__ == "__main__":
    B, S, VOCAB = 16, 13, 24          # S=13 exercises the sublane padding path
    D_IN, E = 128, 128                # input_dim, embedding_dim (lane-dense)
    H1, H2 = 3, 2                     # ffn depths (>=2 hidden blocks in aa ffn)

    key = jax.random.PRNGKey(0)
    k_ids, k_tab, k_temp, k_len, k_par = jax.random.split(key, 5)

    # TODO(synk): pretrained ESM backbone replaced by a deterministic embedding
    # lookup producing a last_hidden_state-shaped tensor (B, S, D_in).
    input_ids = jax.random.randint(k_ids, (B, S), 0, VOCAB)
    embed_table = jax.random.normal(k_tab, (VOCAB, D_IN), jnp.float32)
    esm_embedding = embed_table[input_ids]                      # (B, S, D_in)

    lengths = jax.random.randint(k_len, (B,), 1, S + 1)
    attn_mask = (jnp.arange(S)[None, :] < lengths[:, None]).astype(jnp.float32)
    temperature = jax.random.normal(k_temp, (B, 1), jnp.float32) * 0.1

    params = make_params(k_par, D_IN, E, H1, H2)

    out = encoder_forward(esm_embedding, attn_mask, temperature, params)
    out = jax.block_until_ready(out)

    ref = reference_forward(esm_embedding, attn_mask, temperature, params)
    # bf16 matmul weights + host-side weight fusion reassociation vs f32 reference.
    np.testing.assert_allclose(np.asarray(out), np.asarray(ref),
                               rtol=1e-2, atol=1e-2)
    print("KERNEL_OK")
</pallas_src>

<mosaic_0001>
module attributes {stable_mosaic.version = 11 : i64} {
  func.func @kernel(%arg0: i32, %arg1: memref<8x16x128xbf16, #tpu.memory_space<vmem>>, %arg2: memref<8x16xf32, #tpu.memory_space<vmem>>, %arg3: memref<128x128xbf16, #tpu.memory_space<vmem>>, %arg4: memref<1x128xf32, #tpu.memory_space<vmem>>, %arg5: memref<2x1x128xf32, #tpu.memory_space<vmem>>, %arg6: memref<2x1x128xf32, #tpu.memory_space<vmem>>, %arg7: memref<1x128x128xbf16, #tpu.memory_space<vmem>>, %arg8: memref<1x1x128xf32, #tpu.memory_space<vmem>>, %arg9: memref<8x128xf32, #tpu.memory_space<vmem>>) attributes {dimension_semantics = [#tpu.dimension_semantics<parallel>], iteration_bounds = array<i64: 2>, scalar_prefetch = 0 : i64, scratch_operands = 0 : i64, tpu.core_type = #tpu.core_type<tc>, window_params = [{transform_indices = @transform_0, window_bounds = array<i64: 8, 16, 128>}, {transform_indices = @transform_1, window_bounds = array<i64: 8, 16>}, {pipeline_mode = #tpu.pipeline_mode<synchronous>, transform_indices = @transform_2, window_bounds = array<i64: 128, 128>}, {pipeline_mode = #tpu.pipeline_mode<synchronous>, transform_indices = @transform_3, window_bounds = array<i64: 1, 128>}, {pipeline_mode = #tpu.pipeline_mode<synchronous>, transform_indices = @transform_4, window_bounds = array<i64: 2, 1, 128>}, {pipeline_mode = #tpu.pipeline_mode<synchronous>, transform_indices = @transform_5, window_bounds = array<i64: 2, 1, 128>}, {pipeline_mode = #tpu.pipeline_mode<synchronous>, transform_indices = @transform_6, window_bounds = array<i64: 1, 128, 128>}, {pipeline_mode = #tpu.pipeline_mode<synchronous>, transform_indices = @transform_7, window_bounds = array<i64: 1, 1, 128>}, {transform_indices = @transform_8, window_bounds = array<i64: 8, 128>}]} {
    %c0 = arith.constant 0 : index
    %c0_0 = arith.constant 0 : index
    %c0_1 = arith.constant 0 : index
    %0 = vector.load %arg1[%c0, %c0_0, %c0_1] : memref<8x16x128xbf16, #tpu.memory_space<vmem>>, vector<8x16x128xbf16>
    %1 = vector.shape_cast %0 : vector<8x16x128xbf16> to vector<128x128xbf16>
    %c0_2 = arith.constant 0 : index
    %c0_3 = arith.constant 0 : index
    %2 = vector.load %arg3[%c0_2, %c0_3] : memref<128x128xbf16, #tpu.memory_space<vmem>>, vector<128x128xbf16>
    %cst = arith.constant dense<0.000000e+00> : vector<128x128xf32>
    %3 = tpu.matmul %1, %2, %cst {dimension_numbers = #tpu.dot_dimension_numbers<[1], [0], [0], [1], [0, 0, 1, 1], [], []>} : vector<128x128xbf16>, vector<128x128xbf16>, vector<128x128xf32> -> vector<128x128xf32>
    %c0_4 = arith.constant 0 : index
    %c0_5 = arith.constant 0 : index
    %4 = vector.load %arg4[%c0_4, %c0_5] : memref<1x128xf32, #tpu.memory_space<vmem>>, vector<1x128xf32>
    %5 = vector.broadcast %4 : vector<1x128xf32> to vector<128x128xf32>
    %6 = arith.addf %3, %5 : vector<128x128xf32>
    %cst_6 = arith.constant 0.000000e+00 : f32
    %7 = vector.broadcast %cst_6 : f32 to vector<128x128xf32>
    %8 = arith.maximumf %6, %7 : vector<128x128xf32>
    %c0_7 = arith.constant 0 : index
    %c0_8 = arith.constant 0 : index
    %c0_9 = arith.constant 0 : index
    %9 = vector.load %arg5[%c0_7, %c0_8, %c0_9] : memref<2x1x128xf32, #tpu.memory_space<vmem>>, vector<1x1x128xf32>
    %10 = vector.shape_cast %9 : vector<1x1x128xf32> to vector<1x128xf32>
    %c0_10 = arith.constant 0 : index
    %c0_11 = arith.constant 0 : index
    %c0_12 = arith.constant 0 : index
    %11 = vector.load %arg6[%c0_10, %c0_11, %c0_12] : memref<2x1x128xf32, #tpu.memory_space<vmem>>, vector<1x1x128xf32>
    %12 = vector.shape_cast %11 : vector<1x1x128xf32> to vector<1x128xf32>
    %cst_13 = arith.constant dense<0.000000e+00> : vector<128xf32>
    %13 = vector.multi_reduction <add>, %8, %cst_13 [1] : vector<128x128xf32> to vector<128xf32>
    %14 = vector.shape_cast %13 : vector<128xf32> to vector<128x1xf32>
    %cst_14 = arith.constant 1.280000e+02 : f32
    %15 = vector.broadcast %cst_14 : f32 to vector<128x1xf32>
    %16 = arith.divf %14, %15 : vector<128x1xf32>
    %17 = vector.broadcast %16 : vector<128x1xf32> to vector<128x128xf32>
    %18 = arith.subf %8, %17 : vector<128x128xf32>
    %19 = arith.mulf %18, %18 : vector<128x128xf32>
    %cst_15 = arith.constant dense<0.000000e+00> : vector<128xf32>
    %20 = vector.multi_reduction <add>, %19, %cst_15 [1] : vector<128x128xf32> to vector<128xf32>
    %21 = vector.shape_cast %20 : vector<128xf32> to vector<128x1xf32>
    %cst_16 = arith.constant 1.280000e+02 : f32
    %22 = vector.broadcast %cst_16 : f32 to vector<128x1xf32>
    %23 = arith.divf %21, %22 : vector<128x1xf32>
    %cst_17 = arith.constant 9.99999974E-6 : f32
    %24 = vector.broadcast %cst_17 : f32 to vector<128x1xf32>
    %25 = arith.addf %23, %24 : vector<128x1xf32>
    %26 = math.rsqrt %25 : vector<128x1xf32>
    %27 = vector.broadcast %26 : vector<128x1xf32> to vector<128x128xf32>
    %28 = arith.mulf %18, %27 : vector<128x128xf32>
    %29 = vector.broadcast %10 : vector<1x128xf32> to vector<128x128xf32>
    %30 = arith.mulf %28, %29 : vector<128x128xf32>
    %31 = vector.broadcast %12 : vector<1x128xf32> to vector<128x128xf32>
    %32 = arith.addf %30, %31 : vector<128x128xf32>
    %33 = arith.truncf %32 : vector<128x128xf32> to vector<128x128xbf16>
    %c0_18 = arith.constant 0 : index
    %c0_19 = arith.constant 0 : index
    %c0_20 = arith.constant 0 : index
    %34 = vector.load %arg7[%c0_18, %c0_19, %c0_20] : memref<1x128x128xbf16, #tpu.memory_space<vmem>>, vector<1x128x128xbf16>
    %35 = vector.shape_cast %34 : vector<1x128x128xbf16> to vector<128x128xbf16>
    %cst_21 = arith.constant dense<0.000000e+00> : vector<128x128xf32>
    %36 = tpu.matmul %33, %35, %cst_21 {dimension_numbers = #tpu.dot_dimension_numbers<[1], [0], [0], [1], [0, 0, 1, 1], [], []>} : vector<128x128xbf16>, vector<128x128xbf16>, vector<128x128xf32> -> vector<128x128xf32>
    %c0_22 = arith.constant 0 : index
    %c0_23 = arith.constant 0 : index
    %c0_24 = arith.constant 0 : index
    %37 = vector.load %arg8[%c0_22, %c0_23, %c0_24] : memref<1x1x128xf32, #tpu.memory_space<vmem>>, vector<1x1x128xf32>
    %38 = vector.shape_cast %37 : vector<1x1x128xf32> to vector<1x128xf32>
    %39 = vector.broadcast %38 : vector<1x128xf32> to vector<128x128xf32>
    %40 = arith.addf %36, %39 : vector<128x128xf32>
    %cst_25 = arith.constant 0.000000e+00 : f32
    %41 = vector.broadcast %cst_25 : f32 to vector<128x128xf32>
    %42 = arith.maximumf %40, %41 : vector<128x128xf32>
    %c1 = arith.constant 1 : index
    %c0_26 = arith.constant 0 : index
    %c0_27 = arith.constant 0 : index
    %43 = vector.load %arg5[%c1, %c0_26, %c0_27] : memref<2x1x128xf32, #tpu.memory_space<vmem>>, vector<1x1x128xf32>
    %44 = vector.shape_cast %43 : vector<1x1x128xf32> to vector<1x128xf32>
    %c1_28 = arith.constant 1 : index
    %c0_29 = arith.constant 0 : index
    %c0_30 = arith.constant 0 : index
    %45 = vector.load %arg6[%c1_28, %c0_29, %c0_30] : memref<2x1x128xf32, #tpu.memory_space<vmem>>, vector<1x1x128xf32>
    %46 = vector.shape_cast %45 : vector<1x1x128xf32> to vector<1x128xf32>
    %cst_31 = arith.constant dense<0.000000e+00> : vector<128xf32>
    %47 = vector.multi_reduction <add>, %42, %cst_31 [1] : vector<128x128xf32> to vector<128xf32>
    %48 = vector.shape_cast %47 : vector<128xf32> to vector<128x1xf32>
    %cst_32 = arith.constant 1.280000e+02 : f32
    %49 = vector.broadcast %cst_32 : f32 to vector<128x1xf32>
    %50 = arith.divf %48, %49 : vector<128x1xf32>
    %51 = vector.broadcast %50 : vector<128x1xf32> to vector<128x128xf32>
    %52 = arith.subf %42, %51 : vector<128x128xf32>
    %53 = arith.mulf %52, %52 : vector<128x128xf32>
    %cst_33 = arith.constant dense<0.000000e+00> : vector<128xf32>
    %54 = vector.multi_reduction <add>, %53, %cst_33 [1] : vector<128x128xf32> to vector<128xf32>
    %55 = vector.shape_cast %54 : vector<128xf32> to vector<128x1xf32>
    %cst_34 = arith.constant 1.280000e+02 : f32
    %56 = vector.broadcast %cst_34 : f32 to vector<128x1xf32>
    %57 = arith.divf %55, %56 : vector<128x1xf32>
    %cst_35 = arith.constant 9.99999974E-6 : f32
    %58 = vector.broadcast %cst_35 : f32 to vector<128x1xf32>
    %59 = arith.addf %57, %58 : vector<128x1xf32>
    %60 = math.rsqrt %59 : vector<128x1xf32>
    %61 = vector.broadcast %60 : vector<128x1xf32> to vector<128x128xf32>
    %62 = arith.mulf %52, %61 : vector<128x128xf32>
    %63 = vector.broadcast %44 : vector<1x128xf32> to vector<128x128xf32>
    %64 = arith.mulf %62, %63 : vector<128x128xf32>
    %65 = vector.broadcast %46 : vector<1x128xf32> to vector<128x128xf32>
    %66 = arith.addf %64, %65 : vector<128x128xf32>
    %c0_36 = arith.constant 0 : index
    %c0_37 = arith.constant 0 : index
    %67 = vector.load %arg2[%c0_36, %c0_37] : memref<8x16xf32, #tpu.memory_space<vmem>>, vector<8x16xf32>
    %68 = vector.shape_cast %66 : vector<128x128xf32> to vector<8x16x128xf32>
    %69 = vector.shape_cast %67 : vector<8x16xf32> to vector<8x16x1xf32>
    %70 = vector.broadcast %69 : vector<8x16x1xf32> to vector<8x16x128xf32>
    %71 = arith.mulf %68, %70 : vector<8x16x128xf32>
    %cst_38 = arith.constant dense<0.000000e+00> : vector<8x128xf32>
    %72 = vector.multi_reduction <add>, %71, %cst_38 [1] : vector<8x16x128xf32> to vector<8x128xf32>
    %cst_39 = arith.constant dense<0.000000e+00> : vector<8xf32>
    %73 = vector.multi_reduction <add>, %67, %cst_39 [1] : vector<8x16xf32> to vector<8xf32>
    %74 = vector.shape_cast %73 : vector<8xf32> to vector<8x1xf32>
    %cst_40 = arith.constant 1.000000e+00 : f32
    %75 = vector.broadcast %cst_40 : f32 to vector<8x1xf32>
    %76 = arith.maximumf %74, %75 : vector<8x1xf32>
    %77 = vector.broadcast %76 : vector<8x1xf32> to vector<8x128xf32>
    %78 = arith.divf %72, %77 : vector<8x128xf32>
    %c0_41 = arith.constant 0 : index
    %c0_42 = arith.constant 0 : index
    %79 = vector.load %arg9[%c0_41, %c0_42] : memref<8x128xf32, #tpu.memory_space<vmem>>, vector<8x128xf32>
    tpu.vector_store %arg9[%c0_41, %c0_42], %78 {strides = array<i32>} : memref<8x128xf32, #tpu.memory_space<vmem>>, vector<8x128xf32>,
    return
  }
  func.func @transform_0(%arg0: i32) -> (i32, i32, i32) {
    %c0_i32 = arith.constant 0 : i32
    %c0_i32_0 = arith.constant 0 : i32
    %c0_i32_1 = arith.constant 0 : i32
    return %arg0, %c0_i32, %c0_i32_0 : i32, i32, i32
  }
  func.func @transform_1(%arg0: i32) -> (i32, i32) {
    %c0_i32 = arith.constant 0 : i32
    %c0_i32_0 = arith.constant 0 : i32
    return %arg0, %c0_i32 : i32, i32
  }
  func.func @transform_2(%arg0: i32) -> (i32, i32) {
    %c0_i32 = arith.constant 0 : i32
    %c0_i32_0 = arith.constant 0 : i32
    %c0_i32_1 = arith.constant 0 : i32
    return %c0_i32, %c0_i32_0 : i32, i32
  }
  func.func @transform_3(%arg0: i32) -> (i32, i32) {
    %c0_i32 = arith.constant 0 : i32
    %c0_i32_0 = arith.constant 0 : i32
    %c0_i32_1 = arith.constant 0 : i32
    return %c0_i32, %c0_i32_0 : i32, i32
  }
  func.func @transform_4(%arg0: i32) -> (i32, i32, i32) {
    %c0_i32 = arith.constant 0 : i32
    %c0_i32_0 = arith.constant 0 : i32
    %c0_i32_1 = arith.constant 0 : i32
    %c0_i32_2 = arith.constant 0 : i32
    return %c0_i32, %c0_i32_0, %c0_i32_1 : i32, i32, i32
  }
  func.func @transform_5(%arg0: i32) -> (i32, i32, i32) {
    %c0_i32 = arith.constant 0 : i32
    %c0_i32_0 = arith.constant 0 : i32
    %c0_i32_1 = arith.constant 0 : i32
    %c0_i32_2 = arith.constant 0 : i32
    return %c0_i32, %c0_i32_0, %c0_i32_1 : i32, i32, i32
  }
  func.func @transform_6(%arg0: i32) -> (i32, i32, i32) {
    %c0_i32 = arith.constant 0 : i32
    %c0_i32_0 = arith.constant 0 : i32
    %c0_i32_1 = arith.constant 0 : i32
    %c0_i32_2 = arith.constant 0 : i32
    return %c0_i32, %c0_i32_0, %c0_i32_1 : i32, i32, i32
  }
  func.func @transform_7(%arg0: i32) -> (i32, i32, i32) {
    %c0_i32 = arith.constant 0 : i32
    %c0_i32_0 = arith.constant 0 : i32
    %c0_i32_1 = arith.constant 0 : i32
    %c0_i32_2 = arith.constant 0 : i32
    return %c0_i32, %c0_i32_0, %c0_i32_1 : i32, i32, i32
  }
  func.func @transform_8(%arg0: i32) -> (i32, i32) {
    %c0_i32 = arith.constant 0 : i32
    %c0_i32_0 = arith.constant 0 : i32
    return %arg0, %c0_i32 : i32, i32
  }
}

</mosaic_0001>

<llo_original>
// kernel: tpu_custom_call.1
$region0: #{tpu_custom_call.1}
  #allocation0 [shape = 'u32[]', space=smem, size = 0x4, offset = 0x4, fixed_abs, tag = 'smem constant byte address 0x4 - core index']
  #allocation1 [shape = 'u32[144,128]{1,0:T(1,128)}', space=vmem, size = 0x12000, scoped, tag = 'internal scratch']
  %s0 = inlined_call_operand.hbm [shape: bf16[16,16,128], index: 0, kind: input, shape index: {}]
  %s1 = inlined_call_operand.hbm [shape: f32[16,16], index: 1, kind: input, shape index: {}]
  %s2 = inlined_call_operand.hbm [shape: bf16[128,128], index: 2, kind: input, shape index: {}]
  %s3 = inlined_call_operand.vmem [shape: f32[1,128], index: 3, kind: input, shape index: {}]
  %s4 = inlined_call_operand.vmem [shape: f32[2,1,128], index: 4, kind: input, shape index: {}]
  %s5 = inlined_call_operand.vmem [shape: f32[2,1,128], index: 5, kind: input, shape index: {}]
  %s6 = inlined_call_operand.hbm [shape: bf16[1,128,128], index: 6, kind: input, shape index: {}]
  %s7 = inlined_call_operand.vmem [shape: f32[1,1,128], index: 7, kind: input, shape index: {}]
  %s8 = inlined_call_operand.hbm [shape: f32[16,128], index: 8, kind: output, shape index: {}]
  %s9 = sld [smem:[#allocation0]]
  $region81: #{tpu_custom_call.1} parent=0
    _
  %s11 = ssub.s32 1, %s9
  %s12 = scalar_select 0, %s11, %s9
  $region1: #{tpu_custom_call.1} parent=0
    #allocation2 [shape = 'u8[65536]{0}', space=vmem, size = 0x10000, scoped, tag = 'input window, operand 0']
    #allocation3 [shape = 's32[2]{0}', space=sflag, size = 0x8, scoped, tag = 'scoped memory for tpu_custom_call.1']
    #allocation4 [shape = 's32[2]{0}', space=sflag, size = 0x8, scoped, tag = 'scoped memory for tpu_custom_call.1']
    #allocation5 [shape = 'u8[8192]{0}', space=vmem, size = 0x2000, scoped, tag = 'input window, operand 1']
    #allocation6 [shape = 's32[2]{0}', space=sflag, size = 0x8, scoped, tag = 'scoped memory for tpu_custom_call.1']
    #allocation7 [shape = 'u8[32768]{0}', space=vmem, size = 0x8000, scoped, tag = 'input window, operand 2, single buffered']
    #allocation8 [shape = 'u8[32768]{0}', space=vmem, size = 0x8000, scoped, tag = 'input window, operand 6, single buffered']
    #allocation9 [shape = 's32[1]{0}', space=sflag, size = 0x4, scoped, tag = 'scoped memory for tpu_custom_call.1']
    #allocation10 [shape = 'u8[8192]{0}', space=vmem, size = 0x2000, scoped, tag = 'output window, operand 0']
    %13 = vsyncpa [#allocation3], 0
    %s14 = scalar_lea.sflag [#allocation3], 1
    %15 = vsyncpa %s14, 0
    %16 = vsyncpa [#allocation6], 0
    %s17 = scalar_lea.sflag [#allocation6], 1
    %18 = vsyncpa %s17, 0
    %19 = vsyncpa [#allocation9], 0
    %20 = vsyncpa [#allocation4], 0
    %s21 = scalar_lea.sflag [#allocation4], 1
    %22 = vsyncpa %s21, 0
    loop: start=0, step=1, limit=4
    $region2: #{tpu_custom_call.1} parent=1 // loop_pre_header
      _
    $region3: #{tpu_custom_call.1} parent=1 // loop_header
      %s24 = sphi 0, %s28
      %p25 = scmp.ge.s32.totalorder %s24, 4
      %s34 = sphi 0, %s36
      %s37 = sphi 0, %s34
      %s38 = sphi 0, %s37
      %s54 = sphi 0, %s38
      %s60 = sphi 0, %s62
      %s63 = sphi 0, %s60
      %s64 = sphi 0, %s63
      %s80 = sphi 0, %s64
      %s84 = sphi 0, %s84
      %s86 = sphi 0, %s84
      %s87 = sphi 0, %s86
      %s101 = sphi 0, %s87
      %s105 = sphi 0, %s105
      %s107 = sphi 0, %s105
      %s108 = sphi 0, %s107
      %s122 = sphi 0, %s108
      %s126 = sphi 0, %s126
      %s128 = sphi 0, %s126
      %s129 = sphi 0, %s128
      %s143 = sphi 0, %s129
      %s147 = sphi 0, %s147
      %s149 = sphi 0, %s147
      %s150 = sphi 0, %s149
      %s164 = sphi 0, %s150
      %s168 = sphi 0, %s168
      %s170 = sphi 0, %s168
      %s171 = sphi 0, %s170
      %s185 = sphi 0, %s171
      %s189 = sphi 0, %s189
      %s191 = sphi 0, %s189
      %s192 = sphi 0, %s191
      %s206 = sphi 0, %s192
      %s212 = sphi 0, %s214
      %s215 = sphi 0, %s212
      %s216 = sphi 0, %s215
      %s232 = sphi 0, %s216
    $region4: #{tpu_custom_call.1} parent=1 // loop_header_branch
      %27 = sbr.rel (%p25) target = $region8
    $region5: #{tpu_custom_call.1} parent=1 // loop_body
      %s29 = ssub.s32 %s24, 1
      %s30 = ssub.s32 %s24, 2
      %s31 = sadd.s32 %s24, 1
      %s32 = ssub.s32 %s24, %s31
      %p33 = scmp.eq.s32.totalorder %s32, 0
      %s35 = sadd.s32 %s34, 1
      %s36 = scalar_select %p33, %s34, %s35
      %p39 = pneg %p33
      %p40 = scmp.eq.s32.totalorder %s24, 1
      %p41 = por %p39, %p40
      %p42 = scmp.ne.s32.totalorder %s34, %s37
      %p43 = scmp.eq.s32.totalorder %s24, 0
      %p44 = por %p42, %p43
      %p45 = scmp.ne.s32.totalorder %s34, %s37
      %p46 = scmp.eq.s32.totalorder %s29, 1
      %p47 = por %p45, %p46
      %p48 = scmp.ne.s32.totalorder %s37, %s38
      %p49 = scmp.eq.s32.totalorder %s29, 0
      %p50 = por %p48, %p49
      %p51 = scmp.ne.s32.totalorder %s37, %s38
      %p52 = scmp.eq.s32.totalorder %s30, 1
      %p53 = por %p51, %p52
      %p55 = scmp.ne.s32.totalorder %s38, %s54
      %p56 = scmp.eq.s32.totalorder %s30, 0
      %p57 = por %p55, %p56
      %s58 = ssub.s32 %s24, %s31
      %p59 = scmp.eq.s32.totalorder %s58, 0
      %s61 = sadd.s32 %s60, 1
      %s62 = scalar_select %p59, %s60, %s61
      %p65 = pneg %p59
      %p66 = scmp.eq.s32.totalorder %s24, 1
      %p67 = por %p65, %p66
      %p68 = scmp.ne.s32.totalorder %s60, %s63
      %p69 = scmp.eq.s32.totalorder %s24, 0
      %p70 = por %p68, %p69
      %p71 = scmp.ne.s32.totalorder %s60, %s63
      %p72 = scmp.eq.s32.totalorder %s29, 1
      %p73 = por %p71, %p72
      %p74 = scmp.ne.s32.totalorder %s63, %s64
      %p75 = scmp.eq.s32.totalorder %s29, 0
      %p76 = por %p74, %p75
      %p77 = scmp.ne.s32.totalorder %s63, %s64
      %p78 = scmp.eq.s32.totalorder %s30, 1
      %p79 = por %p77, %p78
      %p81 = scmp.ne.s32.totalorder %s64, %s80
      %p82 = scmp.eq.s32.totalorder %s30, 0
      %p83 = por %p81, %p82
      %s85 = sadd.s32 %s84, 1
      %p88 = scmp.eq.s32.totalorder %s24, 1
      %p89 = scmp.ne.s32.totalorder %s84, %s86
      %p90 = scmp.eq.s32.totalorder %s24, 0
      %p91 = por %p89, %p90
      %p92 = scmp.ne.s32.totalorder %s84, %s86
      %p93 = scmp.eq.s32.totalorder %s29, 1
      %p94 = por %p92, %p93
      %p95 = scmp.ne.s32.totalorder %s86, %s87
      %p96 = scmp.eq.s32.totalorder %s29, 0
      %p97 = por %p95, %p96
      %p98 = scmp.ne.s32.totalorder %s86, %s87
      %p99 = scmp.eq.s32.totalorder %s30, 1
      %p100 = por %p98, %p99
      %p102 = scmp.ne.s32.totalorder %s87, %s101
      %p103 = scmp.eq.s32.totalorder %s30, 0
      %p104 = por %p102, %p103
      %s106 = sadd.s32 %s105, 1
      %p109 = scmp.eq.s32.totalorder %s24, 1
      %p110 = scmp.ne.s32.totalorder %s105, %s107
      %p111 = scmp.eq.s32.totalorder %s24, 0
      %p112 = por %p110, %p111
      %p113 = scmp.ne.s32.totalorder %s105, %s107
      %p114 = scmp.eq.s32.totalorder %s29, 1
      %p115 = por %p113, %p114
      %p116 = scmp.ne.s32.totalorder %s107, %s108
      %p117 = scmp.eq.s32.totalorder %s29, 0
      %p118 = por %p116, %p117
      %p119 = scmp.ne.s32.totalorder %s107, %s108
      %p120 = scmp.eq.s32.totalorder %s30, 1
      %p121 = por %p119, %p120
      %p123 = scmp.ne.s32.totalorder %s108, %s122
      %p124 = scmp.eq.s32.totalorder %s30, 0
      %p125 = por %p123, %p124
      %s127 = sadd.s32 %s126, 1
      %p130 = scmp.eq.s32.totalorder %s24, 1
      %p131 = scmp.ne.s32.totalorder %s126, %s128
      %p132 = scmp.eq.s32.totalorder %s24, 0
      %p133 = por %p131, %p132
      %p134 = scmp.ne.s32.totalorder %s126, %s128
      %p135 = scmp.eq.s32.totalorder %s29, 1
      %p136 = por %p134, %p135
      %p137 = scmp.ne.s32.totalorder %s128, %s129
      %p138 = scmp.eq.s32.totalorder %s29, 0
      %p139 = por %p137, %p138
      %p140 = scmp.ne.s32.totalorder %s128, %s129
      %p141 = scmp.eq.s32.totalorder %s30, 1
      %p142 = por %p140, %p141
      %p144 = scmp.ne.s32.totalorder %s129, %s143
      %p145 = scmp.eq.s32.totalorder %s30, 0
      %p146 = por %p144, %p145
      %s148 = sadd.s32 %s147, 1
      %p151 = scmp.eq.s32.totalorder %s24, 1
      %p152 = scmp.ne.s32.totalorder %s147, %s149
      %p153 = scmp.eq.s32.totalorder %s24, 0
      %p154 = por %p152, %p153
      %p155 = scmp.ne.s32.totalorder %s147, %s149
      %p156 = scmp.eq.s32.totalorder %s29, 1
      %p157 = por %p155, %p156
      %p158 = scmp.ne.s32.totalorder %s149, %s150
      %p159 = scmp.eq.s32.totalorder %s29, 0
      %p160 = por %p158, %p159
      %p161 = scmp.ne.s32.totalorder %s149, %s150
      %p162 = scmp.eq.s32.totalorder %s30, 1
      %p163 = por %p161, %p162
      %p165 = scmp.ne.s32.totalorder %s150, %s164
      %p166 = scmp.eq.s32.totalorder %s30, 0
      %p167 = por %p165, %p166
      %s169 = sadd.s32 %s168, 1
      %p172 = scmp.eq.s32.totalorder %s24, 1
      %p173 = scmp.ne.s32.totalorder %s168, %s170
      %p174 = scmp.eq.s32.totalorder %s24, 0
      %p175 = por %p173, %p174
      %p176 = scmp.ne.s32.totalorder %s168, %s170
      %p177 = scmp.eq.s32.totalorder %s29, 1
      %p178 = por %p176, %p177
      %p179 = scmp.ne.s32.totalorder %s170, %s171
      %p180 = scmp.eq.s32.totalorder %s29, 0
      %p181 = por %p179, %p180
      %p182 = scmp.ne.s32.totalorder %s170, %s171
      %p183 = scmp.eq.s32.totalorder %s30, 1
      %p184 = por %p182, %p183
      %p186 = scmp.ne.s32.totalorder %s171, %s185
      %p187 = scmp.eq.s32.totalorder %s30, 0
      %p188 = por %p186, %p187
      %s190 = sadd.s32 %s189, 1
      %p193 = scmp.eq.s32.totalorder %s24, 1
      %p194 = scmp.ne.s32.totalorder %s189, %s191
      %p195 = scmp.eq.s32.totalorder %s24, 0
      %p196 = por %p194, %p195
      %p197 = scmp.ne.s32.totalorder %s189, %s191
      %p198 = scmp.eq.s32.totalorder %s29, 1
      %p199 = por %p197, %p198
      %p200 = scmp.ne.s32.totalorder %s191, %s192
      %p201 = scmp.eq.s32.totalorder %s29, 0
      %p202 = por %p200, %p201
      %p203 = scmp.ne.s32.totalorder %s191, %s192
      %p204 = scmp.eq.s32.totalorder %s30, 1
      %p205 = por %p203, %p204
      %p207 = scmp.ne.s32.totalorder %s192, %s206
      %p208 = scmp.eq.s32.totalorder %s30, 0
      %p209 = por %p207, %p208
      %s210 = ssub.s32 %s24, %s31
      %p211 = scmp.eq.s32.totalorder %s210, 0
      %s213 = sadd.s32 %s212, 1
      %s214 = scalar_select %p211, %s212, %s213
      %p217 = pneg %p211
      %p218 = scmp.eq.s32.totalorder %s24, 1
      %p219 = por %p217, %p218
      %p220 = scmp.ne.s32.totalorder %s212, %s215
      %p221 = scmp.eq.s32.totalorder %s24, 0
      %p222 = por %p220, %p221
      %p223 = scmp.ne.s32.totalorder %s212, %s215
      %p224 = scmp.eq.s32.totalorder %s29, 1
      %p225 = por %p223, %p224
      %p226 = scmp.ne.s32.totalorder %s215, %s216
      %p227 = scmp.eq.s32.totalorder %s29, 0
      %p228 = por %p226, %p227
      %p229 = scmp.ne.s32.totalorder %s215, %s216
      %p230 = scmp.eq.s32.totalorder %s30, 1
      %p231 = por %p229, %p230
      %p233 = scmp.ne.s32.totalorder %s216, %s232
      %p234 = scmp.eq.s32.totalorder %s30, 0
      %p235 = por %p233, %p234
      %p236 = scmp.le.s32.totalorder 1, %s24
      %p237 = scmp.lt.s32.totalorder %s24, 3
      %p238 = pnand %p236, %p237
      %p239 = pneg %p238
      // Predicated region
      $region9: #{tpu_custom_call.1} parent=5 // pred_check
        _
      $region10: #{tpu_custom_call.1} parent=5 // pred_check_branch
        %241 = sbr.rel (%p238) target = $region12
      $region11: #{tpu_custom_call.1} parent=5 // pred_region
        %s242 = ssub.s32 %s24, 1
        // Predicated region
        $region13: #{tpu_custom_call.1} parent=11 // pred_check
          %p243 = pneg %p97
        $region14: #{tpu_custom_call.1} parent=11 // pred_check_branch
          %245 = sbr.rel (%p243) target = $region16
        $region15: #{tpu_custom_call.1} parent=11 // pred_region
          %s247 = ssub.s32 1024, 1024
          %248 = vsyncadd [#allocation6], %s247
          %s249 = sshll.u32 [#allocation7], 4
          %s250 = int_to_ptr.vmem [resolvable:$true] %s249
          %255 = dma.hbm_to_vmem [thread:$0]  %s2, 1024, %s250, [#allocation6], 64, 64, 4
        $region16: #{tpu_custom_call.1} parent=11 // pred_fallthru
          _
        // Predicated region
        $region17: #{tpu_custom_call.1} parent=11 // pred_check
          %p256 = pneg %p118
        $region18: #{tpu_custom_call.1} parent=11 // pred_check_branch
          %258 = sbr.rel (%p256) target = $region20
        $region19: #{tpu_custom_call.1} parent=11 // pred_region
          _
        $region20: #{tpu_custom_call.1} parent=11 // pred_fallthru
          _
        // Predicated region
        $region21: #{tpu_custom_call.1} parent=11 // pred_check
          %p259 = pneg %p139
        $region22: #{tpu_custom_call.1} parent=11 // pred_check_branch
          %261 = sbr.rel (%p259) target = $region24
        $region23: #{tpu_custom_call.1} parent=11 // pred_region
          _
        $region24: #{tpu_custom_call.1} parent=11 // pred_fallthru
          _
        // Predicated region
        $region25: #{tpu_custom_call.1} parent=11 // pred_check
          %p262 = pneg %p160
        $region26: #{tpu_custom_call.1} parent=11 // pred_check_branch
          %264 = sbr.rel (%p262) target = $region28
        $region27: #{tpu_custom_call.1} parent=11 // pred_region
          _
        $region28: #{tpu_custom_call.1} parent=11 // pred_fallthru
          _
        // Predicated region
        $region29: #{tpu_custom_call.1} parent=11 // pred_check
          %p265 = pneg %p181
        $region30: #{tpu_custom_call.1} parent=11 // pred_check_branch
          %267 = sbr.rel (%p265) target = $region32
        $region31: #{tpu_custom_call.1} parent=11 // pred_region
          %s269 = ssub.s32 1024, 1024
          %270 = vsyncadd [#allocation9], %s269
          %s271 = sshll.u32 [#allocation8], 4
          %s272 = int_to_ptr.vmem [resolvable:$true] %s271
          %277 = dma.hbm_to_vmem [thread:$0]  %s6, 1024, %s272, [#allocation9], 64, 64, 4
        $region32: #{tpu_custom_call.1} parent=11 // pred_fallthru
          _
        // Predicated region
        $region33: #{tpu_custom_call.1} parent=11 // pred_check
          %p278 = pneg %p202
        $region34: #{tpu_custom_call.1} parent=11 // pred_check_branch
          %280 = sbr.rel (%p278) target = $region36
        $region35: #{tpu_custom_call.1} parent=11 // pred_region
          _
        $region36: #{tpu_custom_call.1} parent=11 // pred_fallthru
          _
      $region12: #{tpu_custom_call.1} parent=5 // pred_fallthru
        _
      %p281 = scmp.lt.s32.totalorder %s24, 2
      // Predicated region
      $region37: #{tpu_custom_call.1} parent=5 // pred_check
        %p282 = pneg %p281
      $region38: #{tpu_custom_call.1} parent=5 // pred_check_branch
        %284 = sbr.rel (%p282) target = $region40
      $region39: #{tpu_custom_call.1} parent=5 // pred_region
        // Predicated region
        $region41: #{tpu_custom_call.1} parent=39 // pred_check
          %p285 = pneg %p44
        $region42: #{tpu_custom_call.1} parent=39 // pred_check_branch
          %287 = sbr.rel (%p285) target = $region44
        $region43: #{tpu_custom_call.1} parent=39 // pred_region
          %s288 = sand.u32 %s34, 1
          %s289 = scalar_lea.sflag [#allocation3], %s288
          %s290 = sand.u32 %s34, 1
          %s291 = smul.addr %s290, 64
          %s292 = scalar_lea.vmem [#allocation2], %s291
          %s293 = smul.u32 8, %s24
          %s295 = ssub.s32 1024, 1024
          %296 = vsyncadd %s289, %s295
          %s297 = smul.addr %s293, 2
          %s298 = smul.addr %s297, 64
          %s299 = scalar_lea.hbm %s0, %s298
          %s300 = sshll.u32 %s292, 4
          %s301 = int_to_ptr.vmem [resolvable:$true] %s300
          %306 = dma.hbm_to_vmem [thread:$0]  %s299, 1024, %s301, %s289, 64, 64, 4
        $region44: #{tpu_custom_call.1} parent=39 // pred_fallthru
          _
        // Predicated region
        $region45: #{tpu_custom_call.1} parent=39 // pred_check
          %p307 = pneg %p70
        $region46: #{tpu_custom_call.1} parent=39 // pred_check_branch
          %309 = sbr.rel (%p307) target = $region48
        $region47: #{tpu_custom_call.1} parent=39 // pred_region
          %s310 = sand.u32 %s24, 1
          %s311 = scalar_lea.sflag [#allocation6], %s310
          %s312 = sand.u32 %s60, 1
          %s313 = smul.addr %s312, 8
          %s314 = scalar_lea.vmem [#allocation5], %s313
          %s316 = ssub.s32 128, 128
          %317 = vsyncadd %s311, %s316
          %s318 = smul.addr %s24, 128
          %s319 = scalar_lea.hbm %s1, %s318
          %s321 = sshll.u32 %s314, 4
          %s322 = int_to_ptr.vmem [resolvable:$true] %s321
          %324 = dma.hbm_to_vmem [thread:$0]  %s319, 128, %s322, %s311
        $region48: #{tpu_custom_call.1} parent=39 // pred_fallthru
          _
      $region40: #{tpu_custom_call.1} parent=5 // pred_fallthru
        _
      %p325 = scmp.le.s32.totalorder 1, %s24
      %p326 = scmp.lt.s32.totalorder %s24, 3
      %p327 = pnand %p325, %p326
      %p328 = pneg %p327
      // Predicated region
      $region49: #{tpu_custom_call.1} parent=5 // pred_check
        _
      $region50: #{tpu_custom_call.1} parent=5 // pred_check_branch
        %330 = sbr.rel (%p327) target = $region52
      $region51: #{tpu_custom_call.1} parent=5 // pred_region
        %s331 = ssub.s32 %s24, 1
        %s332 = sand.u32 %s37, 1
        %s333 = scalar_lea.sflag [#allocation3], %s332
        %s334 = sand.u32 %s37, 1
        %s335 = smul.addr %s334, 64
        %s336 = scalar_lea.vmem [#allocation2], %s335
        // Predicated region
        $region53: #{tpu_custom_call.1} parent=51 // pred_check
          %p337 = pneg %p50
        $region54: #{tpu_custom_call.1} parent=51 // pred_check_branch
          %339 = sbr.rel (%p337) target = $region56
        $region55: #{tpu_custom_call.1} parent=51 // pred_region
          %340 = dma.done %s333, 1024
        $region56: #{tpu_custom_call.1} parent=51 // pred_fallthru
          _
        %s341 = sand.u32 %s29, 1
        %s342 = scalar_lea.sflag [#allocation6], %s341
        %s343 = sand.u32 %s63, 1
        %s344 = smul.addr %s343, 8
        %s345 = scalar_lea.vmem [#allocation5], %s344
        // Predicated region
        $region57: #{tpu_custom_call.1} parent=51 // pred_check
          %p346 = pneg %p76
        $region58: #{tpu_custom_call.1} parent=51 // pred_check_branch
          %348 = sbr.rel (%p346) target = $region60
        $region59: #{tpu_custom_call.1} parent=51 // pred_region
          %349 = dma.done %s342, 128
        $region60: #{tpu_custom_call.1} parent=51 // pred_fallthru
          _
        // Predicated region
        $region61: #{tpu_custom_call.1} parent=51 // pred_check
          %p350 = pneg %p97
        $region62: #{tpu_custom_call.1} parent=51 // pred_check_branch
          %352 = sbr.rel (%p350) target = $region64
        $region63: #{tpu_custom_call.1} parent=51 // pred_region
          %353 = dma.done [#allocation6], 1024
        $region64: #{tpu_custom_call.1} parent=51 // pred_fallthru
          _
        // Predicated region
        $region65: #{tpu_custom_call.1} parent=51 // pred_check
          %p354 = pneg %p181
        $region66: #{tpu_custom_call.1} parent=51 // pred_check_branch
          %356 = sbr.rel (%p354) target = $region68
        $region67: #{tpu_custom_call.1} parent=51 // pred_region
          %357 = dma.done [#allocation9], 1024
        $region68: #{tpu_custom_call.1} parent=51 // pred_fallthru
          _
        %s358 = sand.u32 %s37, 1
        %s359 = scalar_lea.sflag [#allocation3], %s358
        %s360 = sand.u32 %s37, 1
        %s361 = smul.addr %s360, 64
        %s362 = scalar_lea.vmem [#allocation2], %s361
        %p363 = pneg %p50
        %p364 = pneg %p47
        %s365 = sand.u32 %s29, 1
        %s366 = scalar_lea.sflag [#allocation6], %s365
        %s367 = sand.u32 %s63, 1
        %s368 = smul.addr %s367, 8
        %s369 = scalar_lea.vmem [#allocation5], %s368
        %p370 = pneg %p76
        %p371 = pneg %p73
        %p372 = pneg %p97
        %p373 = pneg %p94
        %p374 = pneg %p118
        %p375 = pneg %p115
        %p376 = pneg %p139
        %p377 = pneg %p136
        %p378 = pneg %p160
        %p379 = pneg %p157
        %p380 = pneg %p181
        %p381 = pneg %p178
        %p382 = pneg %p202
        %p383 = pneg %p199
        %p384 = pneg %p228
        %p385 = pneg %p225
        %s386 = sand.u32 %s215, 1
        %s387 = scalar_lea.sflag [#allocation4], %s386
        %s388 = sand.u32 %s215, 1
        %s389 = smul.addr %s388, 8
        %s390 = scalar_lea.vmem [#allocation10], %s389
        %s391 = smul.u32 8, %s29
        %v393 = vld [vmem:[%s336] sm:$0xf]
        %v394 = vld [vmem:[%s336 + $0x4] sm:$0xf]
        %v395 = vld [vmem:[%s336 + $0x8] sm:$0xf]
        %v396 = vld [vmem:[%s336 + $0xc] sm:$0xf]
        %v397 = vld [vmem:[%s336 + $0x10] sm:$0xf]
        %v398 = vld [vmem:[%s336 + $0x14] sm:$0xf]
        %v399 = vld [vmem:[%s336 + $0x18] sm:$0xf]
        %v400 = vld [vmem:[%s336 + $0x1c] sm:$0xf]
        %v401 = vld [vmem:[%s336 + $0x20] sm:$0xf]
        %v402 = vld [vmem:[%s336 + $0x24] sm:$0xf]
        %v403 = vld [vmem:[%s336 + $0x28] sm:$0xf]
        %v404 = vld [vmem:[%s336 + $0x2c] sm:$0xf]
        %v405 = vld [vmem:[%s336 + $0x30] sm:$0xf]
        %v406 = vld [vmem:[%s336 + $0x34] sm:$0xf]
        %v407 = vld [vmem:[%s336 + $0x38] sm:$0xf]
        %v408 = vld [vmem:[%s336 + $0x3c] sm:$0xf]
        %v409 = vld [vmem:[#allocation7] sm:$0xf]
        %v410 = vld [vmem:[#allocation7 + $0x4] sm:$0xf]
        %v411 = vld [vmem:[#allocation7 + $0x8] sm:$0xf]
        %v412 = vld [vmem:[#allocation7 + $0xc] sm:$0xf]
        %v413 = vld [vmem:[#allocation7 + $0x10] sm:$0xf]
        %v414 = vld [vmem:[#allocation7 + $0x14] sm:$0xf]
        %v415 = vld [vmem:[#allocation7 + $0x18] sm:$0xf]
        %v416 = vld [vmem:[#allocation7 + $0x1c] sm:$0xf]
        %v417 = vld [vmem:[#allocation7 + $0x20] sm:$0xf]
        %v418 = vld [vmem:[#allocation7 + $0x24] sm:$0xf]
        %v419 = vld [vmem:[#allocation7 + $0x28] sm:$0xf]
        %v420 = vld [vmem:[#allocation7 + $0x2c] sm:$0xf]
        %v421 = vld [vmem:[#allocation7 + $0x30] sm:$0xf]
        %v422 = vld [vmem:[#allocation7 + $0x34] sm:$0xf]
        %v423 = vld [vmem:[#allocation7 + $0x38] sm:$0xf]
        %v424 = vld [vmem:[#allocation7 + $0x3c] sm:$0xf]
        %v425 = vld [vmem:[%s3] sm:$0x1]
        %v427 = vlaneseq
        %v428 = vshrl.u32 %v427, 7
        %v429 = vsub.s32 0, %v428
        %v430 = vrot.slane %v425, %v429
        %v448 = vunpack.c.l.b16 %v393
        %v449 = vunpack.c.l.b16 %v394
        %v450 = vunpack.c.l.b16 %v395
        %v451 = vunpack.c.l.b16 %v396
        %v452 = vunpack.c.l.b16 %v397
        %v453 = vunpack.c.l.b16 %v398
        %v454 = vunpack.c.l.b16 %v399
        %v455 = vunpack.c.l.b16 %v400
        %v456 = vunpack.c.l.b16 %v401
        %v457 = vunpack.c.l.b16 %v402
        %v458 = vunpack.c.l.b16 %v403
        %v459 = vunpack.c.l.b16 %v404
        %v460 = vunpack.c.l.b16 %v405
        %v461 = vunpack.c.l.b16 %v406
        %v462 = vunpack.c.l.b16 %v407
        %v463 = vunpack.c.l.b16 %v408
        %v464 = vpack.c.b16 %v449, %v448
        %v465 = vpack.c.b16 %v451, %v450
        %v466 = vpack.c.b16 %v453, %v452
        %v467 = vpack.c.b16 %v455, %v454
        %v468 = vpack.c.b16 %v457, %v456
        %v469 = vpack.c.b16 %v459, %v458
        %v470 = vpack.c.b16 %v461, %v460
        %v471 = vpack.c.b16 %v463, %v462
        %v496 = vunpack.c.l.b16 %v409
        %v497 = vunpack.c.l.b16 %v410
        %v498 = vunpack.c.l.b16 %v411
        %v499 = vunpack.c.l.b16 %v412
        %v500 = vunpack.c.l.b16 %v413
        %v501 = vunpack.c.l.b16 %v414
        %v502 = vunpack.c.l.b16 %v415
        %v503 = vunpack.c.l.b16 %v416
        %v504 = vunpack.c.l.b16 %v417
        %v505 = vunpack.c.l.b16 %v418
        %v506 = vunpack.c.l.b16 %v419
        %v507 = vunpack.c.l.b16 %v420
        %v508 = vunpack.c.l.b16 %v421
        %v509 = vunpack.c.l.b16 %v422
        %v510 = vunpack.c.l.b16 %v423
        %v511 = vunpack.c.l.b16 %v424
        %v512 = vpack.c.b16 %v497, %v496
        %v513 = vpack.c.b16 %v499, %v498
        %v514 = vpack.c.b16 %v501, %v500
        %v515 = vpack.c.b16 %v503, %v502
        %v516 = vpack.c.b16 %v505, %v504
        %v517 = vpack.c.b16 %v507, %v506
        %v518 = vpack.c.b16 %v509, %v508
        %v519 = vpack.c.b16 %v511, %v510
        %528 = vmatprep.subr.bf16.mxu0 0
        %529 = vmatpush1.bf16.msra.mxu0 %v519
        %530 = vmatprep.subr.bf16.mxu0 0
        %531 = vmatpush1.bf16.msra.mxu0 %v518
        %532 = vmatprep.subr.bf16.mxu0 0
        %533 = vmatpush1.bf16.msra.mxu0 %v517
        %534 = vmatprep.subr.bf16.mxu0 0
        %535 = vmatpush1.bf16.msra.mxu0 %v516
        %536 = vmatprep.subr.bf16.mxu0 0
        %537 = vmatpush1.bf16.msra.mxu0 %v515
        %538 = vmatprep.subr.bf16.mxu0 0
        %539 = vmatpush1.bf16.msra.mxu0 %v514
        %540 = vmatprep.subr.bf16.mxu0 0
        %541 = vmatpush1.bf16.msra.mxu0 %v513
        %542 = vmatprep.subr.bf16.mxu0 0
        %543 = vmatpush1.bf16.msra.mxu0 %v512
        %544 = vmatprep.subr.bf16.mxu0 0
        %545 = vmatpush2.bf16.msra.mxu0 0
        %546 = vmatprep.subr.bf16.mxu0 0
        %547 = vmatpush2.bf16.msra.mxu0 0
        %548 = vmatprep.subr.bf16.mxu0 0
        %549 = vmatpush2.bf16.msra.mxu0 0
        %550 = vmatprep.subr.bf16.mxu0 0
        %551 = vmatpush2.bf16.msra.mxu0 0
        %552 = vmatprep.subr.bf16.mxu0 0
        %553 = vmatpush2.bf16.msra.mxu0 0
        %554 = vmatprep.subr.bf16.mxu0 0
        %555 = vmatpush2.bf16.msra.mxu0 0
        %556 = vmatprep.subr.bf16.mxu0 0
        %557 = vmatpush2.bf16.msra.mxu0 0
        %558 = vmatprep.subr.bf16.mxu0 0
        %559 = vmatpush2.bf16.msra.mxu0 0
        %560 = vmatprep.mubr.bf16.mxu0 0
        %561 = vmatmul.mubr.bf16.gmra.mxu0 %v464
        %v562 = vpop.f32.mrf.mxu0
        %v563 = vadd.f32 %v430, %v562
        %v564 = vpop.f32.mrf.mxu0
        %v565 = vpop.f32.mrf.mxu0
        %v566 = vadd.f32 %v430, %v565
        %v567 = vpop.f32.mrf.mxu0
        %568 = vmatprep.mubr.bf16.mxu0 0
        %569 = vmatmul.mubr.bf16.gmra.mxu0 %v465
        %v570 = vpop.f32.mrf.mxu0
        %v571 = vadd.f32 %v430, %v570
        %v572 = vpop.f32.mrf.mxu0
        %v573 = vpop.f32.mrf.mxu0
        %v574 = vadd.f32 %v430, %v573
        %v575 = vpop.f32.mrf.mxu0
        %576 = vmatprep.mubr.bf16.mxu0 0
        %577 = vmatmul.mubr.bf16.gmra.mxu0 %v466
        %v578 = vpop.f32.mrf.mxu0
        %v579 = vadd.f32 %v430, %v578
        %v580 = vpop.f32.mrf.mxu0
        %v581 = vpop.f32.mrf.mxu0
        %v582 = vadd.f32 %v430, %v581
        %v583 = vpop.f32.mrf.mxu0
        %584 = vmatprep.mubr.bf16.mxu0 0
        %585 = vmatmul.mubr.bf16.gmra.mxu0 %v467
        %v586 = vpop.f32.mrf.mxu0
        %v587 = vadd.f32 %v430, %v586
        %v588 = vpop.f32.mrf.mxu0
        %v589 = vpop.f32.mrf.mxu0
        %v590 = vadd.f32 %v430, %v589
        %v591 = vpop.f32.mrf.mxu0
        %592 = vmatprep.mubr.bf16.mxu0 0
        %593 = vmatmul.mubr.bf16.gmra.mxu0 %v468
        %v594 = vpop.f32.mrf.mxu0
        %v595 = vadd.f32 %v430, %v594
        %v596 = vpop.f32.mrf.mxu0
        %v597 = vpop.f32.mrf.mxu0
        %v598 = vadd.f32 %v430, %v597
        %v599 = vpop.f32.mrf.mxu0
        %600 = vmatprep.mubr.bf16.mxu0 0
        %601 = vmatmul.mubr.bf16.gmra.mxu0 %v469
        %v602 = vpop.f32.mrf.mxu0
        %v603 = vadd.f32 %v430, %v602
        %v604 = vpop.f32.mrf.mxu0
        %v605 = vpop.f32.mrf.mxu0
        %v606 = vadd.f32 %v430, %v605
        %v607 = vpop.f32.mrf.mxu0
        %608 = vmatprep.mubr.bf16.mxu0 0
        %609 = vmatmul.mubr.bf16.gmra.mxu0 %v470
        %v610 = vpop.f32.mrf.mxu0
        %v611 = vadd.f32 %v430, %v610
        %v612 = vpop.f32.mrf.mxu0
        %v613 = vpop.f32.mrf.mxu0
        %v614 = vadd.f32 %v430, %v613
        %v615 = vpop.f32.mrf.mxu0
        %616 = vmatprep.mubr.bf16.mxu0 0
        %617 = vmatmul.mubr.bf16.gmra.mxu0 %v471
        %v618 = vpop.f32.mrf.mxu0
        %v619 = vadd.f32 %v430, %v618
        %v620 = vpop.f32.mrf.mxu0
        %v621 = vpop.f32.mrf.mxu0
        %v622 = vadd.f32 %v430, %v621
        %v623 = vpop.f32.mrf.mxu0
        %624 = vdwg.mxu0
        %v625 = vmax.f32 %v563, 0.0
        %v626 = vmax.f32 %v566, 0.0
        %v627 = vmax.f32 %v571, 0.0
        %v628 = vmax.f32 %v574, 0.0
        %v629 = vmax.f32 %v579, 0.0
        %v630 = vmax.f32 %v582, 0.0
        %v631 = vmax.f32 %v587, 0.0
        %v632 = vmax.f32 %v590, 0.0
        %v633 = vmax.f32 %v595, 0.0
        %v634 = vmax.f32 %v598, 0.0
        %v635 = vmax.f32 %v603, 0.0
        %v636 = vmax.f32 %v606, 0.0
        %v637 = vmax.f32 %v611, 0.0
        %v638 = vmax.f32 %v614, 0.0
        %v639 = vmax.f32 %v619, 0.0
        %v640 = vmax.f32 %v622, 0.0
        %v641 = vld [vmem:[%s4] sm:$0x1]
        %v642 = vld [vmem:[%s5] sm:$0x1]
        %643 = vadd.xlane.f32.xlu0 %v625
        %v644 = vpop.xlane.xlu0 %643
        %645 = vadd.xlane.f32.xlu0 %v626
        %v646 = vpop.xlane.xlu0 %645
        %647 = vadd.xlane.f32.xlu0 %v627
        %v648 = vpop.xlane.xlu0 %647
        %649 = vadd.xlane.f32.xlu0 %v628
        %v650 = vpop.xlane.xlu0 %649
        %651 = vadd.xlane.f32.xlu0 %v629
        %v652 = vpop.xlane.xlu0 %651
        %653 = vadd.xlane.f32.xlu0 %v630
        %v654 = vpop.xlane.xlu0 %653
        %655 = vadd.xlane.f32.xlu0 %v631
        %v656 = vpop.xlane.xlu0 %655
        %657 = vadd.xlane.f32.xlu0 %v632
        %v658 = vpop.xlane.xlu0 %657
        %659 = vadd.xlane.f32.xlu0 %v633
        %v660 = vpop.xlane.xlu0 %659
        %661 = vadd.xlane.f32.xlu0 %v634
        %v662 = vpop.xlane.xlu0 %661
        %663 = vadd.xlane.f32.xlu0 %v635
        %v664 = vpop.xlane.xlu0 %663
        %665 = vadd.xlane.f32.xlu0 %v636
        %v666 = vpop.xlane.xlu0 %665
        %667 = vadd.xlane.f32.xlu0 %v637
        %v668 = vpop.xlane.xlu0 %667
        %669 = vadd.xlane.f32.xlu0 %v638
        %v670 = vpop.xlane.xlu0 %669
        %671 = vadd.xlane.f32.xlu0 %v639
        %v672 = vpop.xlane.xlu0 %671
        %673 = vadd.xlane.f32.xlu0 %v640
        %v674 = vpop.xlane.xlu0 %673
        %v675 = vrcp.pop 128.0
        %v676 = vmul.f32 %v644, %v675
        %v677 = vmul.f32 %v646, %v675
        %v678 = vmul.f32 %v648, %v675
        %v679 = vmul.f32 %v650, %v675
        %v680 = vmul.f32 %v652, %v675
        %v681 = vmul.f32 %v654, %v675
        %v682 = vmul.f32 %v656, %v675
        %v683 = vmul.f32 %v658, %v675
        %v684 = vmul.f32 %v660, %v675
        %v685 = vmul.f32 %v662, %v675
        %v686 = vmul.f32 %v664, %v675
        %v687 = vmul.f32 %v666, %v675
        %v688 = vmul.f32 %v668, %v675
        %v689 = vmul.f32 %v670, %v675
        %v690 = vmul.f32 %v672, %v675
        %v691 = vmul.f32 %v674, %v675
        %v692 = vsub.f32 %v625, %v676
        %v693 = vsub.f32 %v626, %v677
        %v694 = vsub.f32 %v627, %v678
        %v695 = vsub.f32 %v628, %v679
        %v696 = vsub.f32 %v629, %v680
        %v697 = vsub.f32 %v630, %v681
        %v698 = vsub.f32 %v631, %v682
        %v699 = vsub.f32 %v632, %v683
        %v700 = vsub.f32 %v633, %v684
        %v701 = vsub.f32 %v634, %v685
        %v702 = vsub.f32 %v635, %v686
        %v703 = vsub.f32 %v636, %v687
        %v704 = vsub.f32 %v637, %v688
        %v705 = vsub.f32 %v638, %v689
        %v706 = vsub.f32 %v639, %v690
        %v707 = vsub.f32 %v640, %v691
        %v708 = vmul.f32 %v692, %v692
        %v709 = vmul.f32 %v693, %v693
        %v710 = vmul.f32 %v694, %v694
        %v711 = vmul.f32 %v695, %v695
        %v712 = vmul.f32 %v696, %v696
        %v713 = vmul.f32 %v697, %v697
        %v714 = vmul.f32 %v698, %v698
        %v715 = vmul.f32 %v699, %v699
        %v716 = vmul.f32 %v700, %v700
        %v717 = vmul.f32 %v701, %v701
        %v718 = vmul.f32 %v702, %v702
        %v719 = vmul.f32 %v703, %v703
        %v720 = vmul.f32 %v704, %v704
        %v721 = vmul.f32 %v705, %v705
        %v722 = vmul.f32 %v706, %v706
        %v723 = vmul.f32 %v707, %v707
        %724 = vadd.xlane.f32.xlu0 %v708
        %v725 = vpop.xlane.xlu0 %724
        %726 = vadd.xlane.f32.xlu0 %v709
        %v727 = vpop.xlane.xlu0 %726
        %728 = vadd.xlane.f32.xlu0 %v710
        %v729 = vpop.xlane.xlu0 %728
        %730 = vadd.xlane.f32.xlu0 %v711
        %v731 = vpop.xlane.xlu0 %730
        %732 = vadd.xlane.f32.xlu0 %v712
        %v733 = vpop.xlane.xlu0 %732
        %734 = vadd.xlane.f32.xlu0 %v713
        %v735 = vpop.xlane.xlu0 %734
        %736 = vadd.xlane.f32.xlu0 %v714
        %v737 = vpop.xlane.xlu0 %736
        %738 = vadd.xlane.f32.xlu0 %v715
        %v739 = vpop.xlane.xlu0 %738
        %740 = vadd.xlane.f32.xlu0 %v716
        %v741 = vpop.xlane.xlu0 %740
        %742 = vadd.xlane.f32.xlu0 %v717
        %v743 = vpop.xlane.xlu0 %742
        %744 = vadd.xlane.f32.xlu0 %v718
        %v745 = vpop.xlane.xlu0 %744
        %746 = vadd.xlane.f32.xlu0 %v719
        %v747 = vpop.xlane.xlu0 %746
        %748 = vadd.xlane.f32.xlu0 %v720
        %v749 = vpop.xlane.xlu0 %748
        %750 = vadd.xlane.f32.xlu0 %v721
        %v751 = vpop.xlane.xlu0 %750
        %752 = vadd.xlane.f32.xlu0 %v722
        %v753 = vpop.xlane.xlu0 %752
        %754 = vadd.xlane.f32.xlu0 %v723
        %v755 = vpop.xlane.xlu0 %754
        %v756 = vmul.f32 %v725, %v675
        %v757 = vmul.f32 %v727, %v675
        %v758 = vmul.f32 %v729, %v675
        %v759 = vmul.f32 %v731, %v675
        %v760 = vmul.f32 %v733, %v675
        %v761 = vmul.f32 %v735, %v675
        %v762 = vmul.f32 %v737, %v675
        %v763 = vmul.f32 %v739, %v675
        %v764 = vmul.f32 %v741, %v675
        %v765 = vmul.f32 %v743, %v675
        %v766 = vmul.f32 %v745, %v675
        %v767 = vmul.f32 %v747, %v675
        %v768 = vmul.f32 %v749, %v675
        %v769 = vmul.f32 %v751, %v675
        %v770 = vmul.f32 %v753, %v675
        %v771 = vmul.f32 %v755, %v675
        %v772 = vadd.f32 %v756, 1e-05
        %v773 = vadd.f32 %v757, 1e-05
        %v774 = vadd.f32 %v758, 1e-05
        %v775 = vadd.f32 %v759, 1e-05
        %v776 = vadd.f32 %v760, 1e-05
        %v777 = vadd.f32 %v761, 1e-05
        %v778 = vadd.f32 %v762, 1e-05
        %v779 = vadd.f32 %v763, 1e-05
        %v780 = vadd.f32 %v764, 1e-05
        %v781 = vadd.f32 %v765, 1e-05
        %v782 = vadd.f32 %v766, 1e-05
        %v783 = vadd.f32 %v767, 1e-05
        %v784 = vadd.f32 %v768, 1e-05
        %v785 = vadd.f32 %v769, 1e-05
        %v786 = vadd.f32 %v770, 1e-05
        %v787 = vadd.f32 %v771, 1e-05
        %v788 = vrsqrt.pop %v772
        %v789 = vrsqrt.pop %v773
        %v790 = vrsqrt.pop %v774
        %v791 = vrsqrt.pop %v775
        %v792 = vrsqrt.pop %v776
        %v793 = vrsqrt.pop %v777
        %v794 = vrsqrt.pop %v778
        %v795 = vrsqrt.pop %v779
        %v796 = vrsqrt.pop %v780
        %v797 = vrsqrt.pop %v781
        %v798 = vrsqrt.pop %v782
        %v799 = vrsqrt.pop %v783
        %v800 = vrsqrt.pop %v784
        %v801 = vrsqrt.pop %v785
        %v802 = vrsqrt.pop %v786
        %v803 = vrsqrt.pop %v787
        %v804 = vmul.f32 %v692, %v788
        %v805 = vmul.f32 %v693, %v789
        %v806 = vmul.f32 %v694, %v790
        %v807 = vmul.f32 %v695, %v791
        %v808 = vmul.f32 %v696, %v792
        %v809 = vmul.f32 %v697, %v793
        %v810 = vmul.f32 %v698, %v794
        %v811 = vmul.f32 %v699, %v795
        %v812 = vmul.f32 %v700, %v796
        %v813 = vmul.f32 %v701, %v797
        %v814 = vmul.f32 %v702, %v798
        %v815 = vmul.f32 %v703, %v799
        %v816 = vmul.f32 %v704, %v800
        %v817 = vmul.f32 %v705, %v801
        %v818 = vmul.f32 %v706, %v802
        %v819 = vmul.f32 %v707, %v803
        %v821 = vlaneseq
        %v822 = vshrl.u32 %v821, 7
        %v823 = vsub.s32 0, %v822
        %v824 = vrot.slane %v641, %v823
        %v826 = vmul.f32 %v804, %v824
        %v827 = vmul.f32 %v805, %v824
        %v828 = vmul.f32 %v806, %v824
        %v829 = vmul.f32 %v807, %v824
        %v830 = vmul.f32 %v808, %v824
        %v831 = vmul.f32 %v809, %v824
        %v832 = vmul.f32 %v810, %v824
        %v833 = vmul.f32 %v811, %v824
        %v834 = vmul.f32 %v812, %v824
        %v835 = vmul.f32 %v813, %v824
        %v836 = vmul.f32 %v814, %v824
        %v837 = vmul.f32 %v815, %v824
        %v838 = vmul.f32 %v816, %v824
        %v839 = vmul.f32 %v817, %v824
        %v840 = vmul.f32 %v818, %v824
        %v841 = vmul.f32 %v819, %v824
        %v843 = vlaneseq
        %v844 = vshrl.u32 %v843, 7
        %v845 = vsub.s32 0, %v844
        %v846 = vrot.slane %v642, %v845
        %v848 = vadd.f32 %v826, %v846
        %v849 = vadd.f32 %v827, %v846
        %v850 = vadd.f32 %v828, %v846
        %v851 = vadd.f32 %v829, %v846
        %v852 = vadd.f32 %v830, %v846
        %v853 = vadd.f32 %v831, %v846
        %v854 = vadd.f32 %v832, %v846
        %v855 = vadd.f32 %v833, %v846
        %v856 = vadd.f32 %v834, %v846
        %v857 = vadd.f32 %v835, %v846
        %v858 = vadd.f32 %v836, %v846
        %v859 = vadd.f32 %v837, %v846
        %v860 = vadd.f32 %v838, %v846
        %v861 = vadd.f32 %v839, %v846
        %v862 = vadd.f32 %v840, %v846
        %v863 = vadd.f32 %v841, %v846
        %v864 = vpack.c.bf16 %v849, %v848
        %v865 = vpack.c.bf16 %v851, %v850
        %v866 = vpack.c.bf16 %v853, %v852
        %v867 = vpack.c.bf16 %v855, %v854
        %v868 = vpack.c.bf16 %v857, %v856
        %v869 = vpack.c.bf16 %v859, %v858
        %v870 = vpack.c.bf16 %v861, %v860
        %v871 = vpack.c.bf16 %v863, %v862
        %v872 = vld [vmem:[#allocation8] sm:$0xf]
        %v873 = vld [vmem:[#allocation8 + $0x4] sm:$0xf]
        %v874 = vld [vmem:[#allocation8 + $0x8] sm:$0xf]
        %v875 = vld [vmem:[#allocation8 + $0xc] sm:$0xf]
        %v876 = vld [vmem:[#allocation8 + $0x10] sm:$0xf]
        %v877 = vld [vmem:[#allocation8 + $0x14] sm:$0xf]
        %v878 = vld [vmem:[#allocation8 + $0x18] sm:$0xf]
        %v879 = vld [vmem:[#allocation8 + $0x1c] sm:$0xf]
        %v880 = vld [vmem:[#allocation8 + $0x20] sm:$0xf]
        %v881 = vld [vmem:[#allocation8 + $0x24] sm:$0xf]
        %v882 = vld [vmem:[#allocation8 + $0x28] sm:$0xf]
        %v883 = vld [vmem:[#allocation8 + $0x2c] sm:$0xf]
        %v884 = vld [vmem:[#allocation8 + $0x30] sm:$0xf]
        %v885 = vld [vmem:[#allocation8 + $0x34] sm:$0xf]
        %v886 = vld [vmem:[#allocation8 + $0x38] sm:$0xf]
        %v887 = vld [vmem:[#allocation8 + $0x3c] sm:$0xf]
        %v888 = vld [vmem:[%s7] sm:$0x1]
        %v890 = vlaneseq
        %v891 = vshrl.u32 %v890, 7
        %v892 = vsub.s32 0, %v891
        %v893 = vrot.slane %v888, %v892
        %v911 = vunpack.c.l.b16 %v872
        %v912 = vunpack.c.l.b16 %v873
        %v913 = vunpack.c.l.b16 %v874
        %v914 = vunpack.c.l.b16 %v875
        %v915 = vunpack.c.l.b16 %v876
        %v916 = vunpack.c.l.b16 %v877
        %v917 = vunpack.c.l.b16 %v878
        %v918 = vunpack.c.l.b16 %v879
        %v919 = vunpack.c.l.b16 %v880
        %v920 = vunpack.c.l.b16 %v881
        %v921 = vunpack.c.l.b16 %v882
        %v922 = vunpack.c.l.b16 %v883
        %v923 = vunpack.c.l.b16 %v884
        %v924 = vunpack.c.l.b16 %v885
        %v925 = vunpack.c.l.b16 %v886
        %v926 = vunpack.c.l.b16 %v887
        %v927 = vpack.c.b16 %v912, %v911
        %v928 = vpack.c.b16 %v914, %v913
        %v929 = vpack.c.b16 %v916, %v915
        %v930 = vpack.c.b16 %v918, %v917
        %v931 = vpack.c.b16 %v920, %v919
        %v932 = vpack.c.b16 %v922, %v921
        %v933 = vpack.c.b16 %v924, %v923
        %v934 = vpack.c.b16 %v926, %v925
        %943 = vmatprep.subr.bf16.mxu0 0
        %944 = vmatpush1.bf16.msra.mxu0 %v934
        %945 = vmatprep.subr.bf16.mxu0 0
        %946 = vmatpush1.bf16.msra.mxu0 %v933
        %947 = vmatprep.subr.bf16.mxu0 0
        %948 = vmatpush1.bf16.msra.mxu0 %v932
        %949 = vmatprep.subr.bf16.mxu0 0
        %950 = vmatpush1.bf16.msra.mxu0 %v931
        %951 = vmatprep.subr.bf16.mxu0 0
        %952 = vmatpush1.bf16.msra.mxu0 %v930
        %953 = vmatprep.subr.bf16.mxu0 0
        %954 = vmatpush1.bf16.msra.mxu0 %v929
        %955 = vmatprep.subr.bf16.mxu0 0
        %956 = vmatpush1.bf16.msra.mxu0 %v928
        %957 = vmatprep.subr.bf16.mxu0 0
        %958 = vmatpush1.bf16.msra.mxu0 %v927
        %959 = vmatprep.subr.bf16.mxu0 0
        %960 = vmatpush2.bf16.msra.mxu0 0
        %961 = vmatprep.subr.bf16.mxu0 0
        %962 = vmatpush2.bf16.msra.mxu0 0
        %963 = vmatprep.subr.bf16.mxu0 0
        %964 = vmatpush2.bf16.msra.mxu0 0
        %965 = vmatprep.subr.bf16.mxu0 0
        %966 = vmatpush2.bf16.msra.mxu0 0
        %967 = vmatprep.subr.bf16.mxu0 0
        %968 = vmatpush2.bf16.msra.mxu0 0
        %969 = vmatprep.subr.bf16.mxu0 0
        %970 = vmatpush2.bf16.msra.mxu0 0
        %971 = vmatprep.subr.bf16.mxu0 0
        %972 = vmatpush2.bf16.msra.mxu0 0
        %973 = vmatprep.subr.bf16.mxu0 0
        %974 = vmatpush2.bf16.msra.mxu0 0
        %975 = vmatprep.mubr.bf16.mxu0 0
        %976 = vmatmul.mubr.bf16.gmra.mxu0 %v864
        %v977 = vpop.f32.mrf.mxu0
        %v978 = vadd.f32 %v893, %v977
        %v979 = vpop.f32.mrf.mxu0
        %v980 = vpop.f32.mrf.mxu0
        %v981 = vadd.f32 %v893, %v980
        %v982 = vpop.f32.mrf.mxu0
        %983 = vmatprep.mubr.bf16.mxu0 0
        %984 = vmatmul.mubr.bf16.gmra.mxu0 %v865
        %v985 = vpop.f32.mrf.mxu0
        %v986 = vadd.f32 %v893, %v985
        %v987 = vpop.f32.mrf.mxu0
        %v988 = vpop.f32.mrf.mxu0
        %v989 = vadd.f32 %v893, %v988
        %v990 = vpop.f32.mrf.mxu0
        %991 = vmatprep.mubr.bf16.mxu0 0
        %992 = vmatmul.mubr.bf16.gmra.mxu0 %v866
        %v993 = vpop.f32.mrf.mxu0
        %v994 = vadd.f32 %v893, %v993
        %v995 = vpop.f32.mrf.mxu0
        %v996 = vpop.f32.mrf.mxu0
        %v997 = vadd.f32 %v893, %v996
        %v998 = vpop.f32.mrf.mxu0
        %999 = vmatprep.mubr.bf16.mxu0 0
        %1000 = vmatmul.mubr.bf16.gmra.mxu0 %v867
        %v1001 = vpop.f32.mrf.mxu0
        %v1002 = vadd.f32 %v893, %v1001
        %v1003 = vpop.f32.mrf.mxu0
        %v1004 = vpop.f32.mrf.mxu0
        %v1005 = vadd.f32 %v893, %v1004
        %v1006 = vpop.f32.mrf.mxu0
        %1007 = vmatprep.mubr.bf16.mxu0 0
        %1008 = vmatmul.mubr.bf16.gmra.mxu0 %v868
        %v1009 = vpop.f32.mrf.mxu0
        %v1010 = vadd.f32 %v893, %v1009
        %v1011 = vpop.f32.mrf.mxu0
        %v1012 = vpop.f32.mrf.mxu0
        %v1013 = vadd.f32 %v893, %v1012
        %v1014 = vpop.f32.mrf.mxu0
        %1015 = vmatprep.mubr.bf16.mxu0 0
        %1016 = vmatmul.mubr.bf16.gmra.mxu0 %v869
        %v1017 = vpop.f32.mrf.mxu0
        %v1018 = vadd.f32 %v893, %v1017
        %v1019 = vpop.f32.mrf.mxu0
        %v1020 = vpop.f32.mrf.mxu0
        %v1021 = vadd.f32 %v893, %v1020
        %v1022 = vpop.f32.mrf.mxu0
        %1023 = vmatprep.mubr.bf16.mxu0 0
        %1024 = vmatmul.mubr.bf16.gmra.mxu0 %v870
        %v1025 = vpop.f32.mrf.mxu0
        %v1026 = vadd.f32 %v893, %v1025
        %v1027 = vpop.f32.mrf.mxu0
        %v1028 = vpop.f32.mrf.mxu0
        %v1029 = vadd.f32 %v893, %v1028
        %v1030 = vpop.f32.mrf.mxu0
        %1031 = vmatprep.mubr.bf16.mxu0 0
        %1032 = vmatmul.mubr.bf16.gmra.mxu0 %v871
        %v1033 = vpop.f32.mrf.mxu0
        %v1034 = vadd.f32 %v893, %v1033
        %v1035 = vpop.f32.mrf.mxu0
        %v1036 = vpop.f32.mrf.mxu0
        %v1037 = vadd.f32 %v893, %v1036
        %v1038 = vpop.f32.mrf.mxu0
        %1039 = vdwg.mxu0
        %v1040 = vmax.f32 %v978, 0.0
        %v1041 = vmax.f32 %v981, 0.0
        %v1042 = vmax.f32 %v986, 0.0
        %v1043 = vmax.f32 %v989, 0.0
        %v1044 = vmax.f32 %v994, 0.0
        %v1045 = vmax.f32 %v997, 0.0
        %v1046 = vmax.f32 %v1002, 0.0
        %v1047 = vmax.f32 %v1005, 0.0
        %v1048 = vmax.f32 %v1010, 0.0
        %v1049 = vmax.f32 %v1013, 0.0
        %v1050 = vmax.f32 %v1018, 0.0
        %v1051 = vmax.f32 %v1021, 0.0
        %v1052 = vmax.f32 %v1026, 0.0
        %v1053 = vmax.f32 %v1029, 0.0
        %v1054 = vmax.f32 %v1034, 0.0
        %v1055 = vmax.f32 %v1037, 0.0
        %s1056 = scalar_lea.vmem %s4, 1
        %v1057 = vld [vmem:[%s1056] sm:$0x1]
        %s1058 = scalar_lea.vmem %s5, 1
        %v1059 = vld [vmem:[%s1058] sm:$0x1]
        %1060 = vadd.xlane.f32.xlu0 %v1040
        %v1061 = vpop.xlane.xlu0 %1060
        %1062 = vadd.xlane.f32.xlu0 %v1041
        %v1063 = vpop.xlane.xlu0 %1062
        %1064 = vadd.xlane.f32.xlu0 %v1042
        %v1065 = vpop.xlane.xlu0 %1064
        %1066 = vadd.xlane.f32.xlu0 %v1043
        %v1067 = vpop.xlane.xlu0 %1066
        %1068 = vadd.xlane.f32.xlu0 %v1044
        %v1069 = vpop.xlane.xlu0 %1068
        %1070 = vadd.xlane.f32.xlu0 %v1045
        %v1071 = vpop.xlane.xlu0 %1070
        %1072 = vadd.xlane.f32.xlu0 %v1046
        %v1073 = vpop.xlane.xlu0 %1072
        %1074 = vadd.xlane.f32.xlu0 %v1047
        %v1075 = vpop.xlane.xlu0 %1074
        %1076 = vadd.xlane.f32.xlu0 %v1048
        %v1077 = vpop.xlane.xlu0 %1076
        %1078 = vadd.xlane.f32.xlu0 %v1049
        %v1079 = vpop.xlane.xlu0 %1078
        %1080 = vadd.xlane.f32.xlu0 %v1050
        %v1081 = vpop.xlane.xlu0 %1080
        %1082 = vadd.xlane.f32.xlu0 %v1051
        %v1083 = vpop.xlane.xlu0 %1082
        %1084 = vadd.xlane.f32.xlu0 %v1052
        %v1085 = vpop.xlane.xlu0 %1084
        %1086 = vadd.xlane.f32.xlu0 %v1053
        %v1087 = vpop.xlane.xlu0 %1086
        %1088 = vadd.xlane.f32.xlu0 %v1054
        %v1089 = vpop.xlane.xlu0 %1088
        %1090 = vadd.xlane.f32.xlu0 %v1055
        %v1091 = vpop.xlane.xlu0 %1090
        %v1092 = vmul.f32 %v1061, %v675
        %v1093 = vmul.f32 %v1063, %v675
        %v1094 = vmul.f32 %v1065, %v675
        %v1095 = vmul.f32 %v1067, %v675
        %v1096 = vmul.f32 %v1069, %v675
        %v1097 = vmul.f32 %v1071, %v675
        %v1098 = vmul.f32 %v1073, %v675
        %v1099 = vmul.f32 %v1075, %v675
        %v1100 = vmul.f32 %v1077, %v675
        %v1101 = vmul.f32 %v1079, %v675
        %v1102 = vmul.f32 %v1081, %v675
        %v1103 = vmul.f32 %v1083, %v675
        %v1104 = vmul.f32 %v1085, %v675
        %v1105 = vmul.f32 %v1087, %v675
        %v1106 = vmul.f32 %v1089, %v675
        %v1107 = vmul.f32 %v1091, %v675
        %v1108 = vsub.f32 %v1040, %v1092
        %v1109 = vsub.f32 %v1041, %v1093
        %v1110 = vsub.f32 %v1042, %v1094
        %v1111 = vsub.f32 %v1043, %v1095
        %v1112 = vsub.f32 %v1044, %v1096
        %v1113 = vsub.f32 %v1045, %v1097
        %v1114 = vsub.f32 %v1046, %v1098
        %v1115 = vsub.f32 %v1047, %v1099
        %v1116 = vsub.f32 %v1048, %v1100
        %v1117 = vsub.f32 %v1049, %v1101
        %v1118 = vsub.f32 %v1050, %v1102
        %v1119 = vsub.f32 %v1051, %v1103
        %v1120 = vsub.f32 %v1052, %v1104
        %v1121 = vsub.f32 %v1053, %v1105
        %v1122 = vsub.f32 %v1054, %v1106
        %v1123 = vsub.f32 %v1055, %v1107
        %v1124 = vmul.f32 %v1108, %v1108
        %v1125 = vmul.f32 %v1109, %v1109
        %v1126 = vmul.f32 %v1110, %v1110
        %v1127 = vmul.f32 %v1111, %v1111
        %v1128 = vmul.f32 %v1112, %v1112
        %v1129 = vmul.f32 %v1113, %v1113
        %v1130 = vmul.f32 %v1114, %v1114
        %v1131 = vmul.f32 %v1115, %v1115
        %v1132 = vmul.f32 %v1116, %v1116
        %v1133 = vmul.f32 %v1117, %v1117
        %v1134 = vmul.f32 %v1118, %v1118
        %v1135 = vmul.f32 %v1119, %v1119
        %v1136 = vmul.f32 %v1120, %v1120
        %v1137 = vmul.f32 %v1121, %v1121
        %v1138 = vmul.f32 %v1122, %v1122
        %v1139 = vmul.f32 %v1123, %v1123
        %1140 = vadd.xlane.f32.xlu0 %v1124
        %v1141 = vpop.xlane.xlu0 %1140
        %1142 = vadd.xlane.f32.xlu0 %v1125
        %v1143 = vpop.xlane.xlu0 %1142
        %1144 = vadd.xlane.f32.xlu0 %v1126
        %v1145 = vpop.xlane.xlu0 %1144
        %1146 = vadd.xlane.f32.xlu0 %v1127
        %v1147 = vpop.xlane.xlu0 %1146
        %1148 = vadd.xlane.f32.xlu0 %v1128
        %v1149 = vpop.xlane.xlu0 %1148
        %1150 = vadd.xlane.f32.xlu0 %v1129
        %v1151 = vpop.xlane.xlu0 %1150
        %1152 = vadd.xlane.f32.xlu0 %v1130
        %v1153 = vpop.xlane.xlu0 %1152
        %1154 = vadd.xlane.f32.xlu0 %v1131
        %v1155 = vpop.xlane.xlu0 %1154
        %1156 = vadd.xlane.f32.xlu0 %v1132
        %v1157 = vpop.xlane.xlu0 %1156
        %1158 = vadd.xlane.f32.xlu0 %v1133
        %v1159 = vpop.xlane.xlu0 %1158
        %1160 = vadd.xlane.f32.xlu0 %v1134
        %v1161 = vpop.xlane.xlu0 %1160
        %1162 = vadd.xlane.f32.xlu0 %v1135
        %v1163 = vpop.xlane.xlu0 %1162
        %1164 = vadd.xlane.f32.xlu0 %v1136
        %v1165 = vpop.xlane.xlu0 %1164
        %1166 = vadd.xlane.f32.xlu0 %v1137
        %v1167 = vpop.xlane.xlu0 %1166
        %1168 = vadd.xlane.f32.xlu0 %v1138
        %v1169 = vpop.xlane.xlu0 %1168
        %1170 = vadd.xlane.f32.xlu0 %v1139
        %v1171 = vpop.xlane.xlu0 %1170
        %v1172 = vmul.f32 %v1141, %v675
        %v1173 = vmul.f32 %v1143, %v675
        %v1174 = vmul.f32 %v1145, %v675
        %v1175 = vmul.f32 %v1147, %v675
        %v1176 = vmul.f32 %v1149, %v675
        %v1177 = vmul.f32 %v1151, %v675
        %v1178 = vmul.f32 %v1153, %v675
        %v1179 = vmul.f32 %v1155, %v675
        %v1180 = vmul.f32 %v1157, %v675
        %v1181 = vmul.f32 %v1159, %v675
        %v1182 = vmul.f32 %v1161, %v675
        %v1183 = vmul.f32 %v1163, %v675
        %v1184 = vmul.f32 %v1165, %v675
        %v1185 = vmul.f32 %v1167, %v675
        %v1186 = vmul.f32 %v1169, %v675
        %v1187 = vmul.f32 %v1171, %v675
        %v1188 = vadd.f32 %v1172, 1e-05
        %v1189 = vadd.f32 %v1173, 1e-05
        %v1190 = vadd.f32 %v1174, 1e-05
        %v1191 = vadd.f32 %v1175, 1e-05
        %v1192 = vadd.f32 %v1176, 1e-05
        %v1193 = vadd.f32 %v1177, 1e-05
        %v1194 = vadd.f32 %v1178, 1e-05
        %v1195 = vadd.f32 %v1179, 1e-05
        %v1196 = vadd.f32 %v1180, 1e-05
        %v1197 = vadd.f32 %v1181, 1e-05
        %v1198 = vadd.f32 %v1182, 1e-05
        %v1199 = vadd.f32 %v1183, 1e-05
        %v1200 = vadd.f32 %v1184, 1e-05
        %v1201 = vadd.f32 %v1185, 1e-05
        %v1202 = vadd.f32 %v1186, 1e-05
        %v1203 = vadd.f32 %v1187, 1e-05
        %v1204 = vrsqrt.pop %v1188
        %v1205 = vrsqrt.pop %v1189
        %v1206 = vrsqrt.pop %v1190
        %v1207 = vrsqrt.pop %v1191
        %v1208 = vrsqrt.pop %v1192
        %v1209 = vrsqrt.pop %v1193
        %v1210 = vrsqrt.pop %v1194
        %v1211 = vrsqrt.pop %v1195
        %v1212 = vrsqrt.pop %v1196
        %v1213 = vrsqrt.pop %v1197
        %v1214 = vrsqrt.pop %v1198
        %v1215 = vrsqrt.pop %v1199
        %v1216 = vrsqrt.pop %v1200
        %v1217 = vrsqrt.pop %v1201
        %v1218 = vrsqrt.pop %v1202
        %v1219 = vrsqrt.pop %v1203
        %v1220 = vmul.f32 %v1108, %v1204
        %v1221 = vmul.f32 %v1109, %v1205
        %v1222 = vmul.f32 %v1110, %v1206
        %v1223 = vmul.f32 %v1111, %v1207
        %v1224 = vmul.f32 %v1112, %v1208
        %v1225 = vmul.f32 %v1113, %v1209
        %v1226 = vmul.f32 %v1114, %v1210
        %v1227 = vmul.f32 %v1115, %v1211
        %v1228 = vmul.f32 %v1116, %v1212
        %v1229 = vmul.f32 %v1117, %v1213
        %v1230 = vmul.f32 %v1118, %v1214
        %v1231 = vmul.f32 %v1119, %v1215
        %v1232 = vmul.f32 %v1120, %v1216
        %v1233 = vmul.f32 %v1121, %v1217
        %v1234 = vmul.f32 %v1122, %v1218
        %v1235 = vmul.f32 %v1123, %v1219
        %v1237 = vlaneseq
        %v1238 = vshrl.u32 %v1237, 7
        %v1239 = vsub.s32 0, %v1238
        %v1240 = vrot.slane %v1057, %v1239
        %v1242 = vmul.f32 %v1220, %v1240
        %v1243 = vmul.f32 %v1221, %v1240
        %v1244 = vmul.f32 %v1222, %v1240
        %v1245 = vmul.f32 %v1223, %v1240
        %v1246 = vmul.f32 %v1224, %v1240
        %v1247 = vmul.f32 %v1225, %v1240
        %v1248 = vmul.f32 %v1226, %v1240
        %v1249 = vmul.f32 %v1227, %v1240
        %v1250 = vmul.f32 %v1228, %v1240
        %v1251 = vmul.f32 %v1229, %v1240
        %v1252 = vmul.f32 %v1230, %v1240
        %v1253 = vmul.f32 %v1231, %v1240
        %v1254 = vmul.f32 %v1232, %v1240
        %v1255 = vmul.f32 %v1233, %v1240
        %v1256 = vmul.f32 %v1234, %v1240
        %v1257 = vmul.f32 %v1235, %v1240
        %v1259 = vlaneseq
        %v1260 = vshrl.u32 %v1259, 7
        %v1261 = vsub.s32 0, %v1260
        %v1262 = vrot.slane %v1059, %v1261
        %v1264 = vadd.f32 %v1242, %v1262
        %v1265 = vadd.f32 %v1243, %v1262
        %v1266 = vadd.f32 %v1244, %v1262
        %v1267 = vadd.f32 %v1245, %v1262
        %v1268 = vadd.f32 %v1246, %v1262
        %v1269 = vadd.f32 %v1247, %v1262
        %v1270 = vadd.f32 %v1248, %v1262
        %v1271 = vadd.f32 %v1249, %v1262
        %v1272 = vadd.f32 %v1250, %v1262
        %v1273 = vadd.f32 %v1251, %v1262
        %v1274 = vadd.f32 %v1252, %v1262
        %v1275 = vadd.f32 %v1253, %v1262
        %v1276 = vadd.f32 %v1254, %v1262
        %v1277 = vadd.f32 %v1255, %v1262
        %v1278 = vadd.f32 %v1256, %v1262
        %v1279 = vadd.f32 %v1257, %v1262
        %v1280 = vld [vmem:[%s345] sm:$0xff]
        %v1281 = vlaneseq
        %v1282 = vshrl.u32 %v1281, 7
        %v1283 = vsub.s32 0, %v1282
        %v1284 = vrot.slane %v1280, %v1283
        %1286 = vbcast.lane.b32.xlu0 %v1284, 256
        %v1287 = vpop.permute.xlu0 %1286
        %s1289 = sor.u32 256, 8
        %1290 = vbcast.lane.b32.xlu0 %v1284, %s1289
        %v1291 = vpop.permute.xlu0 %1290
        %v1292 = vlaneseq
        %v1293 = vshrl.u32 %v1292, 7
        %v1294 = vsub.s32 1, %v1293
        %v1295 = vrot.slane %v1280, %v1294
        %1297 = vbcast.lane.b32.xlu0 %v1295, 256
        %v1298 = vpop.permute.xlu0 %1297
        %s1300 = sor.u32 256, 8
        %1301 = vbcast.lane.b32.xlu0 %v1295, %s1300
        %v1302 = vpop.permute.xlu0 %1301
        %v1303 = vlaneseq
        %v1304 = vshrl.u32 %v1303, 7
        %v1305 = vsub.s32 2, %v1304
        %v1306 = vrot.slane %v1280, %v1305
        %1308 = vbcast.lane.b32.xlu0 %v1306, 256
        %v1309 = vpop.permute.xlu0 %1308
        %s1311 = sor.u32 256, 8
        %1312 = vbcast.lane.b32.xlu0 %v1306, %s1311
        %v1313 = vpop.permute.xlu0 %1312
        %v1314 = vlaneseq
        %v1315 = vshrl.u32 %v1314, 7
        %v1316 = vsub.s32 3, %v1315
        %v1317 = vrot.slane %v1280, %v1316
        %1319 = vbcast.lane.b32.xlu0 %v1317, 256
        %v1320 = vpop.permute.xlu0 %1319
        %s1322 = sor.u32 256, 8
        %1323 = vbcast.lane.b32.xlu0 %v1317, %s1322
        %v1324 = vpop.permute.xlu0 %1323
        %v1325 = vlaneseq
        %v1326 = vshrl.u32 %v1325, 7
        %v1327 = vsub.s32 4, %v1326
        %v1328 = vrot.slane %v1280, %v1327
        %1330 = vbcast.lane.b32.xlu0 %v1328, 256
        %v1331 = vpop.permute.xlu0 %1330
        %s1333 = sor.u32 256, 8
        %1334 = vbcast.lane.b32.xlu0 %v1328, %s1333
        %v1335 = vpop.permute.xlu0 %1334
        %v1336 = vlaneseq
        %v1337 = vshrl.u32 %v1336, 7
        %v1338 = vsub.s32 5, %v1337
        %v1339 = vrot.slane %v1280, %v1338
        %1341 = vbcast.lane.b32.xlu0 %v1339, 256
        %v1342 = vpop.permute.xlu0 %1341
        %s1344 = sor.u32 256, 8
        %1345 = vbcast.lane.b32.xlu0 %v1339, %s1344
        %v1346 = vpop.permute.xlu0 %1345
        %v1347 = vlaneseq
        %v1348 = vshrl.u32 %v1347, 7
        %v1349 = vsub.s32 6, %v1348
        %v1350 = vrot.slane %v1280, %v1349
        %1352 = vbcast.lane.b32.xlu0 %v1350, 256
        %v1353 = vpop.permute.xlu0 %1352
        %s1355 = sor.u32 256, 8
        %1356 = vbcast.lane.b32.xlu0 %v1350, %s1355
        %v1357 = vpop.permute.xlu0 %1356
        %v1358 = vlaneseq
        %v1359 = vshrl.u32 %v1358, 7
        %v1360 = vsub.s32 7, %v1359
        %v1361 = vrot.slane %v1280, %v1360
        %1363 = vbcast.lane.b32.xlu0 %v1361, 256
        %v1364 = vpop.permute.xlu0 %1363
        %s1366 = sor.u32 256, 8
        %1367 = vbcast.lane.b32.xlu0 %v1361, %s1366
        %v1368 = vpop.permute.xlu0 %1367
        %v1369 = vmul.f32 %v1264, %v1287
        %v1370 = vmul.f32 %v1265, %v1291
        %v1371 = vmul.f32 %v1266, %v1298
        %v1372 = vmul.f32 %v1267, %v1302
        %v1373 = vmul.f32 %v1268, %v1309
        %v1374 = vmul.f32 %v1269, %v1313
        %v1375 = vmul.f32 %v1270, %v1320
        %v1376 = vmul.f32 %v1271, %v1324
        %v1377 = vmul.f32 %v1272, %v1331
        %v1378 = vmul.f32 %v1273, %v1335
        %v1379 = vmul.f32 %v1274, %v1342
        %v1380 = vmul.f32 %v1275, %v1346
        %v1381 = vmul.f32 %v1276, %v1353
        %v1382 = vmul.f32 %v1277, %v1357
        %v1383 = vmul.f32 %v1278, %v1364
        %v1384 = vmul.f32 %v1279, %v1368
        %v1385 = vadd.f32 %v1369, %v1370
        %v1386 = vrot.slane %v1385, 4
        %v1387 = vadd.f32 %v1385, %v1386
        %v1388 = vrot.slane %v1387, 2
        %v1389 = vadd.f32 %v1387, %v1388
        %v1390 = vrot.slane %v1389, 1
        %v1391 = vadd.f32 %v1389, %v1390
        %v1392 = vadd.f32 %v1371, %v1372
        %v1393 = vrot.slane %v1392, 4
        %v1394 = vadd.f32 %v1392, %v1393
        %v1395 = vrot.slane %v1394, 2
        %v1396 = vadd.f32 %v1394, %v1395
        %v1397 = vrot.slane %v1396, 1
        %v1398 = vadd.f32 %v1396, %v1397
        %v1399 = vadd.f32 %v1373, %v1374
        %v1400 = vrot.slane %v1399, 4
        %v1401 = vadd.f32 %v1399, %v1400
        %v1402 = vrot.slane %v1401, 2
        %v1403 = vadd.f32 %v1401, %v1402
        %v1404 = vrot.slane %v1403, 1
        %v1405 = vadd.f32 %v1403, %v1404
        %v1406 = vadd.f32 %v1375, %v1376
        %v1407 = vrot.slane %v1406, 4
        %v1408 = vadd.f32 %v1406, %v1407
        %v1409 = vrot.slane %v1408, 2
        %v1410 = vadd.f32 %v1408, %v1409
        %v1411 = vrot.slane %v1410, 1
        %v1412 = vadd.f32 %v1410, %v1411
        %v1413 = vadd.f32 %v1377, %v1378
        %v1414 = vrot.slane %v1413, 4
        %v1415 = vadd.f32 %v1413, %v1414
        %v1416 = vrot.slane %v1415, 2
        %v1417 = vadd.f32 %v1415, %v1416
        %v1418 = vrot.slane %v1417, 1
        %v1419 = vadd.f32 %v1417, %v1418
        %v1420 = vadd.f32 %v1379, %v1380
        %v1421 = vrot.slane %v1420, 4
        %v1422 = vadd.f32 %v1420, %v1421
        %v1423 = vrot.slane %v1422, 2
        %v1424 = vadd.f32 %v1422, %v1423
        %v1425 = vrot.slane %v1424, 1
        %v1426 = vadd.f32 %v1424, %v1425
        %v1427 = vadd.f32 %v1381, %v1382
        %v1428 = vrot.slane %v1427, 4
        %v1429 = vadd.f32 %v1427, %v1428
        %v1430 = vrot.slane %v1429, 2
        %v1431 = vadd.f32 %v1429, %v1430
        %v1432 = vrot.slane %v1431, 1
        %v1433 = vadd.f32 %v1431, %v1432
        %v1434 = vadd.f32 %v1383, %v1384
        %v1435 = vrot.slane %v1434, 4
        %v1436 = vadd.f32 %v1434, %v1435
        %v1437 = vrot.slane %v1436, 2
        %v1438 = vadd.f32 %v1436, %v1437
        %v1439 = vrot.slane %v1438, 1
        %v1440 = vadd.f32 %v1438, %v1439
        %vm1441 = vcmask 130048
        %v1442 = vsel %vm1441, %v1280, 0.0
        %1443 = vadd.xlane.f32.xlu0 %v1442
        %v1444 = vpop.xlane.xlu0 %1443
        %v1445 = vmax.f32 %v1444, 1.0
        %v1447 = vrot.slane %v1445, 1
        %v1448 = vrot.slane %v1445, 2
        %v1449 = vrot.slane %v1445, 3
        %v1450 = vrot.slane %v1445, 4
        %v1451 = vrot.slane %v1445, 5
        %v1452 = vrot.slane %v1445, 6
        %v1453 = vrot.slane %v1445, 7
        %v1462 = vrcp.pop %v1445
        %v1463 = vmul.f32 %v1391, %v1462
        %v1464 = vrcp.pop %v1447
        %v1465 = vmul.f32 %v1398, %v1464
        %v1466 = vrcp.pop %v1448
        %v1467 = vmul.f32 %v1405, %v1466
        %v1468 = vrcp.pop %v1449
        %v1469 = vmul.f32 %v1412, %v1468
        %v1470 = vrcp.pop %v1450
        %v1471 = vmul.f32 %v1419, %v1470
        %v1472 = vrcp.pop %v1451
        %v1473 = vmul.f32 %v1426, %v1472
        %v1474 = vrcp.pop %v1452
        %v1475 = vmul.f32 %v1433, %v1474
        %v1476 = vrcp.pop %v1453
        %v1477 = vmul.f32 %v1440, %v1476
        %v1486 = vrot.slane %v1465, 7
        %vm1487 = vcmask 1041409
        %v1488 = vsel %vm1487, %v1486, %v1463
        %v1489 = vrot.slane %v1467, 6
        %vm1490 = vcmask 1042434
        %v1491 = vsel %vm1490, %v1489, %v1488
        %v1492 = vrot.slane %v1469, 5
        %vm1493 = vcmask 1043459
        %v1494 = vsel %vm1493, %v1492, %v1491
        %v1495 = vrot.slane %v1471, 4
        %vm1496 = vcmask 1044484
        %v1497 = vsel %vm1496, %v1495, %v1494
        %v1498 = vrot.slane %v1473, 3
        %vm1499 = vcmask 1045509
        %v1500 = vsel %vm1499, %v1498, %v1497
        %v1501 = vrot.slane %v1475, 2
        %vm1502 = vcmask 1046534
        %v1503 = vsel %vm1502, %v1501, %v1500
        %v1504 = vrot.slane %v1477, 1
        %vm1505 = vcmask 1047559
        %v1506 = vsel %vm1505, %v1504, %v1503
        %1508 = vst [vmem:[%s390] sm:$0xff] %v1506
        %s1509 = sand.u32 %s215, 1
        %s1510 = scalar_lea.sflag [#allocation4], %s1509
        %s1511 = sand.u32 %s215, 1
        %s1512 = smul.addr %s1511, 8
        %s1513 = scalar_lea.vmem [#allocation10], %s1512
        // Predicated region
        $region69: #{tpu_custom_call.1} parent=51 // pred_check
          %p1514 = pneg %p225
        $region70: #{tpu_custom_call.1} parent=51 // pred_check_branch
          %1516 = sbr.rel (%p1514) target = $region72
        $region71: #{tpu_custom_call.1} parent=51 // pred_region
          %s1518 = ssub.s32 128, 128
          %1519 = vsyncadd %s1510, %s1518
          %s1520 = smul.addr %s29, 128
          %s1521 = scalar_lea.hbm %s8, %s1520
          %s1523 = sshll.u32 %s1513, 4
          %s1524 = int_to_ptr.vmem [resolvable:$true] %s1523
          %1526 = dma.vmem_to_hbm [thread:$0]  %s1524, 128, %s1521, %s1510
        $region72: #{tpu_custom_call.1} parent=51 // pred_fallthru
          _
      $region52: #{tpu_custom_call.1} parent=5 // pred_fallthru
        _
      %p1527 = scmp.le.s32.totalorder 2, %s24
      // Predicated region
      $region73: #{tpu_custom_call.1} parent=5 // pred_check
        %p1528 = pneg %p1527
      $region74: #{tpu_custom_call.1} parent=5 // pred_check_branch
        %1530 = sbr.rel (%p1528) target = $region76
      $region75: #{tpu_custom_call.1} parent=5 // pred_region
        %s1531 = ssub.s32 %s24, 2
        // Predicated region
        $region77: #{tpu_custom_call.1} parent=75 // pred_check
          %p1532 = pneg %p231
        $region78: #{tpu_custom_call.1} parent=75 // pred_check_branch
          %1534 = sbr.rel (%p1532) target = $region80
        $region79: #{tpu_custom_call.1} parent=75 // pred_region
          %s1535 = sand.u32 %s216, 1
          %s1536 = scalar_lea.sflag [#allocation4], %s1535
          %s1537 = sand.u32 %s216, 1
          %s1538 = smul.addr %s1537, 8
          %s1539 = scalar_lea.vmem [#allocation10], %s1538
          %1540 = dma.done %s1536, 128
        $region80: #{tpu_custom_call.1} parent=75 // pred_fallthru
          _
      $region76: #{tpu_custom_call.1} parent=5 // pred_fallthru
        _
    $region6: #{tpu_custom_call.1} parent=1 // loop_footer
      %s28 = sadd.s32 1, %s24
    $region7: #{tpu_custom_call.1} parent=1 // loop_footer_branch
      %23 = sbr.rel target = $region3
    $region8: #{tpu_custom_call.1} parent=1 // loop_exit
      _
    %1541 = vsyncpa [#allocation3], 1
    %s1542 = scalar_lea.sflag [#allocation3], 1
    %1543 = vsyncpa %s1542, 1
    %1544 = vsyncpa [#allocation6], 1
    %s1545 = scalar_lea.sflag [#allocation6], 1
    %1546 = vsyncpa %s1545, 1
    %1547 = vsyncpa [#allocation9], 1
    %1548 = vsyncpa [#allocation4], 1
    %s1549 = scalar_lea.sflag [#allocation4], 1
    %1550 = vsyncpa %s1549, 1

</llo_original>
